<compile_context>
chip_gen: v7x
topology: tpu7x:2x2x1
jax: 0.10.0
libtpu: 0.0.40
codegen_flags: <defaults>
</compile_context>

<pallas_src>
import math

import jax
import jax.numpy as jnp
import numpy as np
from jax import lax
from jax.experimental import pallas as pl
from jax.experimental.pallas import tpu as pltpu


MATMUL_DTYPE = jnp.bfloat16  # MXU / gather dtype; accumulation is always fp32.


# ------------------------------ small helpers -------------------------------

def _bytes(shape, dtype):
    return int(np.prod(shape)) * jnp.dtype(dtype).itemsize


def _vmem_limit(block_list, scratch_bytes=0):
    """Scoped-VMEM limit from the real working set: double-buffered pipeline
    blocks + scratch + compiler headroom, floored at the smallest default and
    capped at the smallest per-core physical VMEM across generations (v7x 64MiB)."""
    need = scratch_bytes + sum(2 * _bytes(s, dt) for s, dt in block_list) + (4 << 20)
    return int(min(max(need, 16 << 20), 64 << 20))


def _pick_tile(dim, target=512, unit=128):
    """Return (tile, padded_dim).  tile is a 128-multiple (or == dim when small)
    that divides padded_dim; never silently falls back to one giant block."""
    if dim <= target:
        return dim, dim
    best = 0
    for t in range(unit, target + 1, unit):
        if dim % t == 0:
            best = t
    if best:
        return best, dim
    padded = -(-dim // unit) * unit          # pad the reduction dim instead of
    best = unit                              # defeating the tiling (old bug).
    for t in range(unit, target + 1, unit):
        if padded % t == 0:
            best = t
    return best, padded


def _pad_tokens(xf, block_tokens, even_grid=True):
    n = xf.shape[0]
    blocks = max(1, -(-n // block_tokens))
    if even_grid and blocks > 1 and blocks % 2 == 1:
        blocks += 1   # v7x megacore: even parallel token axis across the 2 TCs.
    n_pad = blocks * block_tokens
    if n_pad != n:
        xf = jnp.pad(xf, ((0, n_pad - n), (0, 0)))
    return xf, n_pad


# ----------------------------- Pallas kernels ------------------------------

def _mlp_kernel(x_ref, wgu_ref, bgu_ref, wd_ref, bd_ref, o_ref, acc_ref):
    # Grid: (token blocks i, d_cd tiles j).  acc_ref is an fp32 VMEM accumulator
    # resident across the j ("arbitrary") axis.  wgu is the fused gate|up weight
    # (one MXU pass per tile instead of two).
    j = pl.program_id(1)
    tile_cd = wd_ref.shape[0]

    @pl.when(j == 0)
    def _init():
        acc_ref[...] = jnp.zeros_like(acc_ref)

    x = x_ref[...].astype(wgu_ref.dtype)                                    # bf16
    gu = jnp.dot(x, wgu_ref[...], preferred_element_type=jnp.float32) + bgu_ref[...]
    g = gu[:, :tile_cd]
    u = gu[:, tile_cd:]
    h = (jax.nn.silu(g) * u).astype(wd_ref.dtype)                           # bf16 MXU input
    acc_ref[...] += jnp.dot(h, wd_ref[...], preferred_element_type=jnp.float32)

    @pl.when(j == pl.num_programs(1) - 1)
    def _finish():
        o_ref[...] = (acc_ref[...] + bd_ref[...]).astype(o_ref.dtype)


def mlp_pallas(x, wgu, bgu, wd, bd, *, block_tokens, tile_cd):
    n, d = x.shape
    d_cd_pad = wd.shape[0]
    nj = d_cd_pad // tile_cd
    grid = (n // block_tokens, nj)
    out_dtype = MATMUL_DTYPE  # bf16 mlp_out halves the HBM write + re-read.

    blocks = [((block_tokens, d), x.dtype),
              ((d, 2 * tile_cd), wgu.dtype),
              ((1, 2 * tile_cd), bgu.dtype),
              ((tile_cd, d), wd.dtype),
              ((1, d), bd.dtype),
              ((block_tokens, d), out_dtype)]
    limit = _vmem_limit(blocks, _bytes((block_tokens, d), jnp.float32))
    cost = pl.CostEstimate(
        flops=6 * n * d * d_cd_pad,
        transcendentals=n * d_cd_pad,
        bytes_accessed=_bytes((n, d), x.dtype) + _bytes((n, d), out_dtype)
        + _bytes(wgu.shape, wgu.dtype) + _bytes(wd.shape, wd.dtype))

    return pl.pallas_call(
        _mlp_kernel,
        out_shape=jax.ShapeDtypeStruct((n, d), out_dtype),
        grid=grid,
        in_specs=[
            pl.BlockSpec((block_tokens, d), lambda i, j: (i, 0)),
            pl.BlockSpec((d, 2 * tile_cd), lambda i, j: (0, j)),
            pl.BlockSpec((1, 2 * tile_cd), lambda i, j: (0, j)),
            pl.BlockSpec((tile_cd, d), lambda i, j: (j, 0)),
            pl.BlockSpec((1, d), lambda i, j: (0, 0)),
        ],
        out_specs=pl.BlockSpec((block_tokens, d), lambda i, j: (i, 0)),
        scratch_shapes=[pltpu.VMEM((block_tokens, d), jnp.float32)],
        compiler_params=pltpu.CompilerParams(
            dimension_semantics=("parallel", "arbitrary"),
            vmem_limit_bytes=limit),
        cost_estimate=cost,
    )(x, wgu, bgu, wd, bd)


def _query_sim_kernel(x_ref, wq_ref, keys_ref, sim_ref):
    # Per-group (2*H groups on the inner grid axis):
    #   x: [TM, D]; wq_g: [1, D, half_er]; keys_g: [1, half_er, NK]; sim_g: [1, TM, NK]
    x = x_ref[...].astype(wq_ref.dtype)
    q = jnp.dot(x, wq_ref[0], preferred_element_type=jnp.float32)
    s = jnp.dot(q.astype(keys_ref.dtype), keys_ref[0],
                preferred_element_type=jnp.float32)
    sim_ref[0] = s.astype(sim_ref.dtype)


def query_sim_pallas(x, wq_g, keys_g, *, block_tokens):
    n, d = x.shape
    g_total, _, half_er = wq_g.shape
    nk = keys_g.shape[2]
    grid = (n // block_tokens, g_total)

    blocks = [((block_tokens, d), x.dtype),
              ((1, d, half_er), wq_g.dtype),
              ((1, half_er, nk), keys_g.dtype),
              ((1, block_tokens, nk), jnp.float32)]
    limit = _vmem_limit(blocks)
    cost = pl.CostEstimate(
        flops=2 * n * d * g_total * half_er + 2 * n * g_total * half_er * nk,
        transcendentals=0,
        bytes_accessed=_bytes((n, d), x.dtype) + _bytes(wq_g.shape, wq_g.dtype)
        + _bytes(keys_g.shape, keys_g.dtype)
        + _bytes((g_total, n, nk), jnp.float32))

    # sim stays fp32: it feeds top-k routing and bf16 could flip near-tie picks.
    return pl.pallas_call(
        _query_sim_kernel,
        out_shape=jax.ShapeDtypeStruct((g_total, n, nk), jnp.float32),
        grid=grid,
        in_specs=[
            pl.BlockSpec((block_tokens, d), lambda i, g: (i, 0)),
            pl.BlockSpec((1, d, half_er), lambda i, g: (g, 0, 0)),
            pl.BlockSpec((1, half_er, nk), lambda i, g: (g, 0, 0)),
        ],
        out_specs=pl.BlockSpec((1, block_tokens, nk), lambda i, g: (g, i, 0)),
        compiler_params=pltpu.CompilerParams(
            dimension_semantics=("parallel", "parallel"),
            vmem_limit_bytes=limit),
        cost_estimate=cost,
    )(x, wq_g, keys_g)


def _expert_mix_kernel(x_ref, de_ref, ue_ref, sc_ref, mlp_ref, o_ref, acc_ref):
    # Grid: (token blocks i, heads h).  acc_ref is fp32 [TM, D], resident across
    # the h ("arbitrary") axis.  Per-step expert blocks are [1, TM, K, D] so the
    # working set stays small enough for v7x's 64 MiB VMEM at real sizes.
    h = pl.program_id(1)

    @pl.when(h == 0)
    def _init():
        acc_ref[...] = jnp.zeros_like(acc_ref)

    x_b = x_ref[...].astype(MATMUL_DTYPE)          # [TM, D] bf16 (VPU packed)
    de = de_ref[0]                                  # [TM, K, D] bf16
    ue = ue_ref[0]                                  # [TM, K, D] bf16
    sc = sc_ref[0].astype(jnp.float32)              # [TM, K]

    # Exact softmax(scores) over the K selected experts.
    m = jnp.max(sc, axis=-1, keepdims=True)
    e = jnp.exp(sc - m)
    gate = e / jnp.sum(e, axis=-1, keepdims=True)   # [TM, K]

    k_experts = de.shape[1]
    acc = jnp.zeros(acc_ref.shape, jnp.float32)
    # Unrolled over the small K axis (bounds vreg live ranges; bf16 multiplies,
    # fp32 reductions).
    for k in range(k_experts):
        wk = jnp.sum((x_b * de[:, k, :]).astype(jnp.float32), axis=-1,
                     keepdims=True)                             # [TM, 1]
        wk = jax.nn.silu(wk) * gate[:, k:k + 1]                 # [TM, 1]
        acc = acc + wk * ue[:, k, :].astype(jnp.float32)        # [TM, D]
    acc_ref[...] += acc

    @pl.when(h == pl.num_programs(1) - 1)
    def _finish():
        # Fused residual add with the dense-MLP branch (saves an extra HBM pass).
        o_ref[...] = (acc_ref[...] + mlp_ref[...].astype(jnp.float32)
                      ).astype(o_ref.dtype)


def expert_mix_pallas(x, down_e, up_e, scores, mlp_out, *, block_tokens):
    n, d = x.shape
    h, _, k, _ = down_e.shape
    grid = (n // block_tokens, h)

    blocks = [((block_tokens, d), x.dtype),
              ((1, block_tokens, k, d), down_e.dtype),
              ((1, block_tokens, k, d), up_e.dtype),
              ((1, block_tokens, k), scores.dtype),
              ((block_tokens, d), mlp_out.dtype),
              ((block_tokens, d), x.dtype)]
    limit = _vmem_limit(blocks, _bytes((block_tokens, d), jnp.float32))
    cost = pl.CostEstimate(
        flops=4 * n * h * k * d,
        transcendentals=2 * n * h * k,
        bytes_accessed=_bytes((n, d), x.dtype) + 2 * _bytes((h, n, k, d), down_e.dtype)
        + _bytes((h, n, k), scores.dtype) + 2 * _bytes((n, d), x.dtype))

    return pl.pallas_call(
        _expert_mix_kernel,
        out_shape=jax.ShapeDtypeStruct((n, d), x.dtype),
        grid=grid,
        in_specs=[
            pl.BlockSpec((block_tokens, d), lambda i, hh: (i, 0)),
            pl.BlockSpec((1, block_tokens, k, d), lambda i, hh: (hh, i, 0, 0)),
            pl.BlockSpec((1, block_tokens, k, d), lambda i, hh: (hh, i, 0, 0)),
            pl.BlockSpec((1, block_tokens, k), lambda i, hh: (hh, i, 0)),
            pl.BlockSpec((block_tokens, d), lambda i, hh: (i, 0)),
        ],
        out_specs=pl.BlockSpec((block_tokens, d), lambda i, hh: (i, 0)),
        scratch_shapes=[pltpu.VMEM((block_tokens, d), jnp.float32)],
        compiler_params=pltpu.CompilerParams(
            dimension_semantics=("parallel", "arbitrary"),
            vmem_limit_bytes=limit),
        cost_estimate=cost,
    )(x, down_e, up_e, scores, mlp_out)


# --------------------------- one-time weight prep ---------------------------

def prepare_params(params, *, n_heads, num_keys, half_er, target_tile_cd=512):
    """Repack weights once per weight update (cache outside the forward pass):
    bf16 casts, fused gate|up layout per d_cd tile, per-group query/key layout."""
    cd = MATMUL_DTYPE
    wg, wu = params["wg"], params["wu"]
    bg, bu = params["bg"], params["bu"]
    wd, bd = params["wd"], params["bd"]
    d, d_cd = wg.shape
    tile_cd, d_cd_pad = _pick_tile(d_cd, target=target_tile_cd)
    if d_cd_pad != d_cd:
        pad = d_cd_pad - d_cd
        wg = jnp.pad(wg, ((0, 0), (0, pad)))
        wu = jnp.pad(wu, ((0, 0), (0, pad)))
        bg = jnp.pad(bg, ((0, 0), (0, pad)))
        bu = jnp.pad(bu, ((0, 0), (0, pad)))
        wd = jnp.pad(wd, ((0, pad), (0, 0)))
    nj = d_cd_pad // tile_cd
    # Interleave per tile: columns [gate_tile_j | up_tile_j] so one block per j.
    wgu = jnp.stack([wg.reshape(d, nj, tile_cd), wu.reshape(d, nj, tile_cd)],
                    axis=2).reshape(d, 2 * d_cd_pad).astype(cd)
    bgu = jnp.stack([bg.reshape(1, nj, tile_cd), bu.reshape(1, nj, tile_cd)],
                    axis=2).reshape(1, 2 * d_cd_pad).astype(jnp.float32)

    g_total = 2 * n_heads
    # Query columns are (p, h, e)-major; regroup to [2H, D, half_er].
    wq_g = params["wq"].reshape(d, 2, n_heads, half_er).transpose(1, 2, 0, 3) \
        .reshape(g_total, d, half_er).astype(cd)
    # keys [H, NK, 2, half_er] -> per group [2H, half_er, NK].
    keys_g = params["keys"].transpose(2, 0, 3, 1) \
        .reshape(g_total, half_er, num_keys).astype(cd)

    return dict(
        wgu=wgu, bgu=bgu, wd=wd.astype(cd), bd=bd.astype(jnp.float32),
        wq_g=wq_g, keys_g=keys_g,
        down_embed=params["down_embed"].astype(cd),
        up_embed=params["up_embed"].astype(cd),
        tile_cd=tile_cd, d_cd_pad=d_cd_pad,
    )


# ----------------------------- CDMoE forward -------------------------------

def cdmoe_forward(x, params, prep=None, *, n_heads, n_experts_per_head, num_keys,
                  half_er, block_tokens=256):
    if prep is None:
        prep = prepare_params(params, n_heads=n_heads, num_keys=num_keys,
                              half_er=half_er)
    b, t, d = x.shape
    n = b * t
    xf = x.reshape(n, d)
    xp, n_pad = _pad_tokens(xf, block_tokens)          # remainder-safe token tiling

    # Dense MLP branch (Pallas, fused gate|up, tiled over d_cd, bf16 output).
    mlp_out = mlp_pallas(xp, prep["wgu"], prep["bgu"], prep["wd"], prep["bd"],
                         block_tokens=block_tokens, tile_cd=prep["tile_cd"])

    # Product-key routing: per-group query projection + key similarity.
    sim = query_sim_pallas(xp, prep["wq_g"], prep["keys_g"],
                           block_tokens=block_tokens)        # [2H, N, NK] fp32
    sim_r = sim.reshape(2, n_heads, n_pad, num_keys)

    # TODO(synk): two-stage top-k + index arithmetic has no clean Pallas TPU
    # equivalent; it stays in plain JAX glue.
    kpe = n_experts_per_head
    scores_xy, indices_xy = lax.top_k(sim_r, kpe)            # [2, H, N, kpe]
    sx, sy = scores_xy[0], scores_xy[1]
    ix, iy = indices_xy[0], indices_xy[1]
    all_scores = (sx[..., :, None] + sy[..., None, :]
                  ).reshape(n_heads, n_pad, kpe * kpe)
    all_indices = (ix[..., :, None] * num_keys + iy[..., None, :]
                   ).reshape(n_heads, n_pad, kpe * kpe)
    scores, pk_indices = lax.top_k(all_scores, kpe)          # [H, N, kpe]
    indices = jnp.take_along_axis(all_indices, pk_indices, axis=-1)

    # TODO(synk): at real model sizes this gather should move inside the expert
    # kernel (scalar-prefetched indices + per-row DMA from the HBM embedding
    # tables) to kill the [H,N,K,D] HBM round trip; kept in JAX here (bf16 rows).
    down_e = prep["down_embed"][indices]                     # [H, N, kpe, D] bf16
    up_e = prep["up_embed"][indices]                         # [H, N, kpe, D] bf16

    # Expert mixing over H-tiles + fused mlp_out residual add (Pallas).
    out_pad = expert_mix_pallas(xp, down_e, up_e, scores, mlp_out,
                                block_tokens=block_tokens)

    out = out_pad[:n].reshape(b, t, d)
    aux = dict(xf=xf, mlp_out=mlp_out[:n], sim=sim_r[:, :, :n],
               scores=scores[:, :n], indices=indices[:, :n])
    return out, aux


# ------------------------------- parameters --------------------------------

def init_params(key, d_model, d_cd, d_er, n_experts, n_heads):
    num_keys = int(math.sqrt(n_experts))
    ks = jax.random.split(key, 10)

    def dense(k, fan_in, shape):
        return jax.random.normal(k, shape, jnp.float32) / math.sqrt(fan_in)

    return dict(
        wg=dense(ks[0], d_model, (d_model, d_cd)),
        bg=dense(ks[1], d_model, (1, d_cd)),
        wu=dense(ks[2], d_model, (d_model, d_cd)),
        bu=dense(ks[3], d_model, (1, d_cd)),
        wd=dense(ks[4], d_cd, (d_cd, d_model)),
        bd=dense(ks[5], d_cd, (1, d_model)),
        wq=dense(ks[6], d_model, (d_model, d_er * n_heads)),
        keys=dense(ks[7], d_er // 2, (n_heads, num_keys, 2, d_er // 2)),
        down_embed=0.1 * jax.random.normal(ks[8], (n_experts, d_model), jnp.float32),
        up_embed=0.1 * jax.random.normal(ks[9], (n_experts, d_model), jnp.float32),
    )


# ------------------------------ pure-JAX refs ------------------------------
# The references mirror the kernel's bf16-input / fp32-accumulate convention so
# the comparison isolates kernel correctness rather than quantization error.

def ref_mlp(xf, p):
    cd = MATMUL_DTYPE
    x = xf.astype(cd)
    g = jnp.dot(x, p["wg"].astype(cd), preferred_element_type=jnp.float32) + p["bg"]
    u = jnp.dot(x, p["wu"].astype(cd), preferred_element_type=jnp.float32) + p["bu"]
    h = (jax.nn.silu(g) * u).astype(cd)
    return jnp.dot(h, p["wd"].astype(cd), preferred_element_type=jnp.float32) + p["bd"]


def ref_sim(xf, p, n_heads, half_er):
    cd = MATMUL_DTYPE
    q = jnp.dot(xf.astype(cd), p["wq"].astype(cd),
                preferred_element_type=jnp.float32)
    q = q.reshape(xf.shape[0], 2, n_heads, half_er).astype(cd)
    return jnp.einsum("nphe,hkpe->nphk", q, p["keys"].astype(cd),
                      preferred_element_type=jnp.float32)


def ref_expert_mix(xf, p, indices, scores):
    hi = lax.Precision.HIGHEST
    de = p["down_embed"][indices].astype(MATMUL_DTYPE).astype(jnp.float32)
    ue = p["up_embed"][indices].astype(MATMUL_DTYPE).astype(jnp.float32)
    w = jnp.einsum("nd,nhkd->nhk", xf, de, precision=hi)
    w = jax.nn.silu(w) * jax.nn.softmax(scores, axis=-1)
    return jnp.einsum("nhk,nhkd->nd", w, ue, precision=hi)


# ---------------------------------- main ------------------------------------

if __name__ == "__main__":
    D_MODEL, D_CD, D_ER = 32, 64, 16
    N_EXPERTS, N_HEADS, KPE = 64, 2, 4
    NUM_KEYS = int(math.sqrt(N_EXPERTS))
    B, T = 2, 8

    key = jax.random.PRNGKey(0)
    kx, kp = jax.random.split(key)
    x = jax.random.normal(kx, (B, T, D_MODEL), jnp.float32)
    params = init_params(kp, D_MODEL, D_CD, D_ER, N_EXPERTS, N_HEADS)
    prep = prepare_params(params, n_heads=N_HEADS, num_keys=NUM_KEYS,
                          half_er=D_ER // 2)

    out, aux = cdmoe_forward(x, params, prep, n_heads=N_HEADS,
                             n_experts_per_head=KPE, num_keys=NUM_KEYS,
                             half_er=D_ER // 2, block_tokens=256)
    out = jax.block_until_ready(out)
    assert out.shape == (B, T, D_MODEL)
    assert bool(jnp.all(jnp.isfinite(out)))

    # Correctness checks of the Pallas kernels against pure-JAX references.
    xf = aux["xf"]
    n = B * T

    mlp_ref_v = ref_mlp(xf, params)
    assert np.allclose(np.asarray(aux["mlp_out"].astype(jnp.float32)),
                       np.asarray(mlp_ref_v), atol=5e-2, rtol=5e-2)

    sim_ref_v = ref_sim(xf, params, N_HEADS, D_ER // 2)          # [n, 2, H, NK]
    sim_kernel = jnp.transpose(aux["sim"], (2, 0, 1, 3))         # [n, 2, H, NK]
    assert np.allclose(np.asarray(sim_kernel), np.asarray(sim_ref_v),
                       atol=5e-2, rtol=5e-2)

    indices_n = jnp.transpose(aux["indices"], (1, 0, 2))          # [n, H, kpe]
    scores_n = jnp.transpose(aux["scores"], (1, 0, 2))            # [n, H, kpe]
    ref_out = mlp_ref_v + ref_expert_mix(xf, params, indices_n, scores_n)
    assert np.allclose(np.asarray(out.reshape(n, D_MODEL)), np.asarray(ref_out),
                       atol=5e-2, rtol=5e-2)

    print("KERNEL_OK")
</pallas_src>

<mosaic_0001>
module attributes {stable_mosaic.version = 11 : i64} {
  func.func @_mlp_kernel(%arg0: i32, %arg1: i32, %arg2: memref<256x32xf32, #tpu.memory_space<vmem>>, %arg3: memref<32x128xbf16, #tpu.memory_space<vmem>>, %arg4: memref<1x128xf32, #tpu.memory_space<vmem>>, %arg5: memref<64x32xbf16, #tpu.memory_space<vmem>>, %arg6: memref<1x32xf32, #tpu.memory_space<vmem>>, %arg7: memref<256x32xbf16, #tpu.memory_space<vmem>>, %arg8: memref<256x32xf32, #tpu.memory_space<vmem>>) attributes {dimension_semantics = [#tpu.dimension_semantics<parallel>, #tpu.dimension_semantics<arbitrary>], iteration_bounds = array<i64: 1, 1>, scalar_prefetch = 0 : i64, scratch_operands = 1 : i64, tpu.core_type = #tpu.core_type<tc>, window_params = [{transform_indices = @transform_0, window_bounds = array<i64: 256, 32>}, {transform_indices = @transform_1, window_bounds = array<i64: 32, 128>}, {transform_indices = @transform_2, window_bounds = array<i64: 1, 128>}, {transform_indices = @transform_3, window_bounds = array<i64: 64, 32>}, {pipeline_mode = #tpu.pipeline_mode<synchronous>, transform_indices = @transform_4, window_bounds = array<i64: 1, 32>}, {transform_indices = @transform_5, window_bounds = array<i64: 256, 32>}]} {
    %c0_i32 = arith.constant 0 : i32
    %0 = arith.cmpi eq, %arg1, %c0_i32 : i32
    %1 = arith.extui %0 : i1 to i32
    %c0_i32_0 = arith.constant 0 : i32
    %2 = arith.cmpi ne, %1, %c0_i32_0 : i32
    scf.if %2 {
      %cst_16 = arith.constant 0.000000e+00 : f32
      %28 = vector.broadcast %cst_16 : f32 to vector<256x32xf32>
      %c0_17 = arith.constant 0 : index
      %c0_18 = arith.constant 0 : index
      %29 = vector.load %arg8[%c0_17, %c0_18] : memref<256x32xf32, #tpu.memory_space<vmem>>, vector<256x32xf32>
      tpu.vector_store %arg8[%c0_17, %c0_18], %28 {strides = array<i32>} : memref<256x32xf32, #tpu.memory_space<vmem>>, vector<256x32xf32>,
    } else {
    }
    %c0 = arith.constant 0 : index
    %c0_1 = arith.constant 0 : index
    %3 = vector.load %arg2[%c0, %c0_1] : memref<256x32xf32, #tpu.memory_space<vmem>>, vector<256x32xf32>
    %4 = arith.truncf %3 : vector<256x32xf32> to vector<256x32xbf16>
    %c0_2 = arith.constant 0 : index
    %c0_3 = arith.constant 0 : index
    %5 = vector.load %arg3[%c0_2, %c0_3] : memref<32x128xbf16, #tpu.memory_space<vmem>>, vector<32x128xbf16>
    %cst = arith.constant dense<0.000000e+00> : vector<256x128xf32>
    %6 = tpu.matmul %4, %5, %cst {dimension_numbers = #tpu.dot_dimension_numbers<[1], [0], [0], [1], [0, 0, 1, 1], [], []>} : vector<256x32xbf16>, vector<32x128xbf16>, vector<256x128xf32> -> vector<256x128xf32>
    %c0_4 = arith.constant 0 : index
    %c0_5 = arith.constant 0 : index
    %7 = vector.load %arg4[%c0_4, %c0_5] : memref<1x128xf32, #tpu.memory_space<vmem>>, vector<1x128xf32>
    %8 = vector.broadcast %7 : vector<1x128xf32> to vector<256x128xf32>
    %9 = arith.addf %6, %8 : vector<256x128xf32>
    %10 = vector.extract_strided_slice %9 {offsets = [0, 0], sizes = [256, 64], strides = [1, 1]} : vector<256x128xf32> to vector<256x64xf32>
    %11 = vector.extract_strided_slice %9 {offsets = [0, 64], sizes = [256, 64], strides = [1, 1]} : vector<256x128xf32> to vector<256x64xf32>
    %12 = arith.negf %10 : vector<256x64xf32>
    %13 = math.exp %12 : vector<256x64xf32>
    %cst_6 = arith.constant 1.000000e+00 : f32
    %14 = vector.broadcast %cst_6 : f32 to vector<256x64xf32>
    %15 = arith.addf %14, %13 : vector<256x64xf32>
    %16 = arith.divf %14, %15 : vector<256x64xf32>
    %17 = arith.mulf %10, %16 : vector<256x64xf32>
    %18 = arith.mulf %17, %11 : vector<256x64xf32>
    %19 = arith.truncf %18 : vector<256x64xf32> to vector<256x64xbf16>
    %c0_7 = arith.constant 0 : index
    %c0_8 = arith.constant 0 : index
    %20 = vector.load %arg8[%c0_7, %c0_8] : memref<256x32xf32, #tpu.memory_space<vmem>>, vector<256x32xf32>
    %c0_9 = arith.constant 0 : index
    %c0_10 = arith.constant 0 : index
    %21 = vector.load %arg5[%c0_9, %c0_10] : memref<64x32xbf16, #tpu.memory_space<vmem>>, vector<64x32xbf16>
    %cst_11 = arith.constant dense<0.000000e+00> : vector<256x32xf32>
    %22 = tpu.matmul %19, %21, %cst_11 {dimension_numbers = #tpu.dot_dimension_numbers<[1], [0], [0], [1], [0, 0, 1, 1], [], []>} : vector<256x64xbf16>, vector<64x32xbf16>, vector<256x32xf32> -> vector<256x32xf32>
    %23 = arith.addf %20, %22 : vector<256x32xf32>
    %c0_12 = arith.constant 0 : index
    %c0_13 = arith.constant 0 : index
    %24 = vector.load %arg8[%c0_12, %c0_13] : memref<256x32xf32, #tpu.memory_space<vmem>>, vector<256x32xf32>
    tpu.vector_store %arg8[%c0_12, %c0_13], %23 {strides = array<i32>} : memref<256x32xf32, #tpu.memory_space<vmem>>, vector<256x32xf32>,
    %c0_i32_14 = arith.constant 0 : i32
    %25 = arith.cmpi eq, %arg1, %c0_i32_14 : i32
    %26 = arith.extui %25 : i1 to i32
    %c0_i32_15 = arith.constant 0 : i32
    %27 = arith.cmpi ne, %26, %c0_i32_15 : i32
    scf.if %27 {
      %c0_16 = arith.constant 0 : index
      %c0_17 = arith.constant 0 : index
      %28 = vector.load %arg8[%c0_16, %c0_17] : memref<256x32xf32, #tpu.memory_space<vmem>>, vector<256x32xf32>
      %c0_18 = arith.constant 0 : index
      %c0_19 = arith.constant 0 : index
      %29 = vector.load %arg6[%c0_18, %c0_19] : memref<1x32xf32, #tpu.memory_space<vmem>>, vector<1x32xf32>
      %30 = vector.broadcast %29 : vector<1x32xf32> to vector<256x32xf32>
      %31 = arith.addf %28, %30 : vector<256x32xf32>
      %32 = arith.truncf %31 : vector<256x32xf32> to vector<256x32xbf16>
      %c0_20 = arith.constant 0 : index
      %c0_21 = arith.constant 0 : index
      %33 = vector.load %arg7[%c0_20, %c0_21] : memref<256x32xbf16, #tpu.memory_space<vmem>>, vector<256x32xbf16>
      tpu.vector_store %arg7[%c0_20, %c0_21], %32 {strides = array<i32>} : memref<256x32xbf16, #tpu.memory_space<vmem>>, vector<256x32xbf16>,
    } else {
    }
    return
  }
  func.func @transform_0(%arg0: i32, %arg1: i32) -> (i32, i32) {
    %c0_i32 = arith.constant 0 : i32
    %c0_i32_0 = arith.constant 0 : i32
    return %arg0, %c0_i32 : i32, i32
  }
  func.func @transform_1(%arg0: i32, %arg1: i32) -> (i32, i32) {
    %c0_i32 = arith.constant 0 : i32
    %c0_i32_0 = arith.constant 0 : i32
    return %c0_i32, %arg1 : i32, i32
  }
  func.func @transform_2(%arg0: i32, %arg1: i32) -> (i32, i32) {
    %c0_i32 = arith.constant 0 : i32
    %c0_i32_0 = arith.constant 0 : i32
    return %c0_i32, %arg1 : i32, i32
  }
  func.func @transform_3(%arg0: i32, %arg1: i32) -> (i32, i32) {
    %c0_i32 = arith.constant 0 : i32
    %c0_i32_0 = arith.constant 0 : i32
    return %arg1, %c0_i32 : i32, i32
  }
  func.func @transform_4(%arg0: i32, %arg1: i32) -> (i32, i32) {
    %c0_i32 = arith.constant 0 : i32
    %c0_i32_0 = arith.constant 0 : i32
    %c0_i32_1 = arith.constant 0 : i32
    return %c0_i32, %c0_i32_0 : i32, i32
  }
  func.func @transform_5(%arg0: i32, %arg1: i32) -> (i32, i32) {
    %c0_i32 = arith.constant 0 : i32
    %c0_i32_0 = arith.constant 0 : i32
    return %arg0, %c0_i32 : i32, i32
  }
}

</mosaic_0001>

<llo_original>
// kernel: tpu_custom_call.1
$region0: #{tpu_custom_call.1}
  #allocation0 [shape = 'u32[]', space=smem, size = 0x4, offset = 0x4, fixed_abs, tag = 'smem constant byte address 0x4 - core index']
  #allocation1 [shape = 'u32[144,128]{1,0:T(1,128)}', space=vmem, size = 0x12000, scoped, tag = 'internal scratch']
  #allocation2 [shape = 'f32[256,32]{1,0:T(8,128)}', space=vmem, size = 0x20000, scoped, tag = 'scratch operand']
  %s0 = inlined_call_operand.vmem [shape: f32[256,32], index: 0, kind: input, shape index: {}]
  %s1 = inlined_call_operand.vmem [shape: bf16[32,128], index: 1, kind: input, shape index: {}]
  %s2 = inlined_call_operand.vmem [shape: f32[1,128], index: 2, kind: input, shape index: {}]
  %s3 = inlined_call_operand.vmem [shape: bf16[64,32], index: 3, kind: input, shape index: {}]
  %s4 = inlined_call_operand.vmem [shape: f32[1,32], index: 4, kind: input, shape index: {}]
  %s5 = inlined_call_operand.vmem [shape: bf16[256,32], index: 5, kind: output, shape index: {}]
  %s6 = sld [smem:[#allocation0]]
  $region38: #{tpu_custom_call.1} parent=0
    _
  %s8 = ssub.s32 1, %s6
  %s9 = scalar_select 0, %s8, %s6
  // Predicated region
  $region2: #{tpu_custom_call.1} parent=0 // pred_check
    _
  $region3: #{tpu_custom_call.1} parent=0 // pred_check_branch
    %11 = sbr.rel (0) target = $region5
  $region4: #{tpu_custom_call.1} parent=0 // pred_region
    _
  $region5: #{tpu_custom_call.1} parent=0 // pred_fallthru
    _
  // Predicated region
  $region6: #{tpu_custom_call.1} parent=0 // pred_check
    _
  $region7: #{tpu_custom_call.1} parent=0 // pred_check_branch
    %13 = sbr.rel (0) target = $region9
  $region8: #{tpu_custom_call.1} parent=0 // pred_region
    _
  $region9: #{tpu_custom_call.1} parent=0 // pred_fallthru
    _
  // Predicated region
  $region10: #{tpu_custom_call.1} parent=0 // pred_check
    _
  $region11: #{tpu_custom_call.1} parent=0 // pred_check_branch
    %15 = sbr.rel (0) target = $region13
  $region12: #{tpu_custom_call.1} parent=0 // pred_region
    _
  $region13: #{tpu_custom_call.1} parent=0 // pred_fallthru
    _
  // Predicated region
  $region14: #{tpu_custom_call.1} parent=0 // pred_check
    _
  $region15: #{tpu_custom_call.1} parent=0 // pred_check_branch
    %17 = sbr.rel (0) target = $region17
  $region16: #{tpu_custom_call.1} parent=0 // pred_region
    _
  $region17: #{tpu_custom_call.1} parent=0 // pred_fallthru
    _
  // Predicated region
  $region18: #{tpu_custom_call.1} parent=0 // pred_check
    _
  $region19: #{tpu_custom_call.1} parent=0 // pred_check_branch
    %19 = sbr.rel (0) target = $region21
  $region20: #{tpu_custom_call.1} parent=0 // pred_region
    _
  $region21: #{tpu_custom_call.1} parent=0 // pred_fallthru
    _
  %p21 = scmp.eq.s32.totalorder 0, 0
  // Predicated region
  $region22: #{tpu_custom_call.1} parent=0 // pred_check
    %p22 = pneg %p21
  $region23: #{tpu_custom_call.1} parent=0 // pred_check_branch
    %24 = sbr.rel (%p22) target = $region25
  $region24: #{tpu_custom_call.1} parent=0 // pred_region
    %vm25 = vcmask 261120
    %26 = vst.msk [vmem:[#allocation2] sm:$0xff] %vm25, 0.0
    %27 = vst.msk [vmem:[#allocation2 + $0x8] sm:$0xff] %vm25, 0.0
    %28 = vst.msk [vmem:[#allocation2 + $0x10] sm:$0xff] %vm25, 0.0
    %29 = vst.msk [vmem:[#allocation2 + $0x18] sm:$0xff] %vm25, 0.0
    %30 = vst.msk [vmem:[#allocation2 + $0x20] sm:$0xff] %vm25, 0.0
    %31 = vst.msk [vmem:[#allocation2 + $0x28] sm:$0xff] %vm25, 0.0
    %32 = vst.msk [vmem:[#allocation2 + $0x30] sm:$0xff] %vm25, 0.0
    %33 = vst.msk [vmem:[#allocation2 + $0x38] sm:$0xff] %vm25, 0.0
    %34 = vst.msk [vmem:[#allocation2 + $0x40] sm:$0xff] %vm25, 0.0
    %35 = vst.msk [vmem:[#allocation2 + $0x48] sm:$0xff] %vm25, 0.0
    %36 = vst.msk [vmem:[#allocation2 + $0x50] sm:$0xff] %vm25, 0.0
    %37 = vst.msk [vmem:[#allocation2 + $0x58] sm:$0xff] %vm25, 0.0
    %38 = vst.msk [vmem:[#allocation2 + $0x60] sm:$0xff] %vm25, 0.0
    %39 = vst.msk [vmem:[#allocation2 + $0x68] sm:$0xff] %vm25, 0.0
    %40 = vst.msk [vmem:[#allocation2 + $0x70] sm:$0xff] %vm25, 0.0
    %41 = vst.msk [vmem:[#allocation2 + $0x78] sm:$0xff] %vm25, 0.0
    %42 = vst.msk [vmem:[#allocation2 + $0x80] sm:$0xff] %vm25, 0.0
    %43 = vst.msk [vmem:[#allocation2 + $0x88] sm:$0xff] %vm25, 0.0
    %44 = vst.msk [vmem:[#allocation2 + $0x90] sm:$0xff] %vm25, 0.0
    %45 = vst.msk [vmem:[#allocation2 + $0x98] sm:$0xff] %vm25, 0.0
    %46 = vst.msk [vmem:[#allocation2 + $0xa0] sm:$0xff] %vm25, 0.0
    %47 = vst.msk [vmem:[#allocation2 + $0xa8] sm:$0xff] %vm25, 0.0
    %48 = vst.msk [vmem:[#allocation2 + $0xb0] sm:$0xff] %vm25, 0.0
    %49 = vst.msk [vmem:[#allocation2 + $0xb8] sm:$0xff] %vm25, 0.0
    %50 = vst.msk [vmem:[#allocation2 + $0xc0] sm:$0xff] %vm25, 0.0
    %51 = vst.msk [vmem:[#allocation2 + $0xc8] sm:$0xff] %vm25, 0.0
    %52 = vst.msk [vmem:[#allocation2 + $0xd0] sm:$0xff] %vm25, 0.0
    %53 = vst.msk [vmem:[#allocation2 + $0xd8] sm:$0xff] %vm25, 0.0
    %54 = vst.msk [vmem:[#allocation2 + $0xe0] sm:$0xff] %vm25, 0.0
    %55 = vst.msk [vmem:[#allocation2 + $0xe8] sm:$0xff] %vm25, 0.0
    %56 = vst.msk [vmem:[#allocation2 + $0xf0] sm:$0xff] %vm25, 0.0
    %57 = vst.msk [vmem:[#allocation2 + $0xf8] sm:$0xff] %vm25, 0.0
  $region25: #{tpu_custom_call.1} parent=0 // pred_fallthru
    _
  %v58 = vld [vmem:[%s0] sm:$0xff]
  %v59 = vld [vmem:[%s0 + $0x8] sm:$0xff]
  %v60 = vld [vmem:[%s0 + $0x10] sm:$0xff]
  %v61 = vld [vmem:[%s0 + $0x18] sm:$0xff]
  %v62 = vld [vmem:[%s0 + $0x20] sm:$0xff]
  %v63 = vld [vmem:[%s0 + $0x28] sm:$0xff]
  %v64 = vld [vmem:[%s0 + $0x30] sm:$0xff]
  %v65 = vld [vmem:[%s0 + $0x38] sm:$0xff]
  %v66 = vld [vmem:[%s0 + $0x40] sm:$0xff]
  %v67 = vld [vmem:[%s0 + $0x48] sm:$0xff]
  %v68 = vld [vmem:[%s0 + $0x50] sm:$0xff]
  %v69 = vld [vmem:[%s0 + $0x58] sm:$0xff]
  %v70 = vld [vmem:[%s0 + $0x60] sm:$0xff]
  %v71 = vld [vmem:[%s0 + $0x68] sm:$0xff]
  %v72 = vld [vmem:[%s0 + $0x70] sm:$0xff]
  %v73 = vld [vmem:[%s0 + $0x78] sm:$0xff]
  %v74 = vld [vmem:[%s0 + $0x80] sm:$0xff]
  %v75 = vld [vmem:[%s0 + $0x88] sm:$0xff]
  %v76 = vld [vmem:[%s0 + $0x90] sm:$0xff]
  %v77 = vld [vmem:[%s0 + $0x98] sm:$0xff]
  %v78 = vld [vmem:[%s0 + $0xa0] sm:$0xff]
  %v79 = vld [vmem:[%s0 + $0xa8] sm:$0xff]
  %v80 = vld [vmem:[%s0 + $0xb0] sm:$0xff]
  %v81 = vld [vmem:[%s0 + $0xb8] sm:$0xff]
  %v82 = vld [vmem:[%s0 + $0xc0] sm:$0xff]
  %v83 = vld [vmem:[%s0 + $0xc8] sm:$0xff]
  %v84 = vld [vmem:[%s0 + $0xd0] sm:$0xff]
  %v85 = vld [vmem:[%s0 + $0xd8] sm:$0xff]
  %v86 = vld [vmem:[%s0 + $0xe0] sm:$0xff]
  %v87 = vld [vmem:[%s0 + $0xe8] sm:$0xff]
  %v88 = vld [vmem:[%s0 + $0xf0] sm:$0xff]
  %v89 = vld [vmem:[%s0 + $0xf8] sm:$0xff]
  %v90 = vpack.c.bf16 %v59, %v58
  %v91 = vpack.c.bf16 %v61, %v60
  %v92 = vpack.c.bf16 %v63, %v62
  %v93 = vpack.c.bf16 %v65, %v64
  %v94 = vpack.c.bf16 %v67, %v66
  %v95 = vpack.c.bf16 %v69, %v68
  %v96 = vpack.c.bf16 %v71, %v70
  %v97 = vpack.c.bf16 %v73, %v72
  %v98 = vpack.c.bf16 %v75, %v74
  %v99 = vpack.c.bf16 %v77, %v76
  %v100 = vpack.c.bf16 %v79, %v78
  %v101 = vpack.c.bf16 %v81, %v80
  %v102 = vpack.c.bf16 %v83, %v82
  %v103 = vpack.c.bf16 %v85, %v84
  %v104 = vpack.c.bf16 %v87, %v86
  %v105 = vpack.c.bf16 %v89, %v88
  %v106 = vld [vmem:[%s1] sm:$0xf]
  %v107 = vld [vmem:[%s1 + $0x4] sm:$0xf]
  %v108 = vld [vmem:[%s1 + $0x8] sm:$0xf]
  %v109 = vld [vmem:[%s1 + $0xc] sm:$0xf]
  %v110 = vld [vmem:[%s2] sm:$0x1]
  %v112 = vlaneseq
  %v113 = vshrl.u32 %v112, 7
  %v114 = vsub.s32 0, %v113
  %v115 = vrot.slane %v110, %v114
  %v121 = vunpack.c.l.b16 %v106
  %v122 = vunpack.c.l.b16 %v107
  %v123 = vunpack.c.l.b16 %v108
  %v124 = vunpack.c.l.b16 %v109
  %v125 = vpack.c.b16 %v122, %v121
  %v126 = vpack.c.b16 %v124, %v123
  %vm129 = vcmask 261120
  %v131 = vsel %vm129, %v90, 0
  %v134 = vsel %vm129, %v91, 0
  %v137 = vsel %vm129, %v92, 0
  %v140 = vsel %vm129, %v93, 0
  %v143 = vsel %vm129, %v94, 0
  %v146 = vsel %vm129, %v95, 0
  %v149 = vsel %vm129, %v96, 0
  %v152 = vsel %vm129, %v97, 0
  %v155 = vsel %vm129, %v98, 0
  %v158 = vsel %vm129, %v99, 0
  %v161 = vsel %vm129, %v100, 0
  %v164 = vsel %vm129, %v101, 0
  %v167 = vsel %vm129, %v102, 0
  %v170 = vsel %vm129, %v103, 0
  %v173 = vsel %vm129, %v104, 0
  %v176 = vsel %vm129, %v105, 0
  %178 = vmatprep.subr.bf16.mxu0 0
  %179 = vmatpush1.bf16.msra.mxu0 %v125
  %180 = vmatprep.subr.bf16.mxu0 0
  %181 = vmatpush1.bf16.msra.mxu0 %v126
  %182 = vmatprep.subr.bf16.mxu0 0
  %183 = vmatpush1.bf16.msra.mxu0 0
  %184 = vmatprep.subr.bf16.mxu0 0
  %185 = vmatpush1.bf16.msra.mxu0 0
  %186 = vmatprep.subr.bf16.mxu0 0
  %187 = vmatpush1.bf16.msra.mxu0 0
  %188 = vmatprep.subr.bf16.mxu0 0
  %189 = vmatpush1.bf16.msra.mxu0 0
  %190 = vmatprep.subr.bf16.mxu0 0
  %191 = vmatpush1.bf16.msra.mxu0 0
  %192 = vmatprep.subr.bf16.mxu0 0
  %193 = vmatpush1.bf16.msra.mxu0 0
  %194 = vmatprep.subr.bf16.mxu0 0
  %195 = vmatpush1.bf16.msra.mxu0 0
  %196 = vmatprep.subr.bf16.mxu0 0
  %197 = vmatpush1.bf16.msra.mxu0 0
  %198 = vmatprep.subr.bf16.mxu0 0
  %199 = vmatpush1.bf16.msra.mxu0 0
  %200 = vmatprep.subr.bf16.mxu0 0
  %201 = vmatpush1.bf16.msra.mxu0 0
  %202 = vmatprep.subr.bf16.mxu0 0
  %203 = vmatpush1.bf16.msra.mxu0 0
  %204 = vmatprep.subr.bf16.mxu0 0
  %205 = vmatpush1.bf16.msra.mxu0 0
  %206 = vmatprep.subr.bf16.mxu0 0
  %207 = vmatpush1.bf16.msra.mxu0 0
  %208 = vmatprep.subr.bf16.mxu0 0
  %209 = vmatpush1.bf16.msra.mxu0 0
  %210 = vmatprep.mubr.bf16.mxu0 0
  %211 = vmatmul.mubr.bf16.gmra.mrb[0].mxu0 %v131
  %v212 = vpop.f32.mrb[0].mxu0
  %v213 = vadd.f32 %v115, %v212
  %v214 = vpop.f32.mrb[0].mxu0
  %v215 = vpop.f32.mrb[0].mxu0
  %v216 = vadd.f32 %v115, %v215
  %v217 = vpop.f32.mrb[0].mxu0
  %218 = vmatprep.mubr.bf16.mxu0 0
  %219 = vmatmul.mubr.bf16.gmra.mrb[0].mxu0 %v134
  %v220 = vpop.f32.mrb[0].mxu0
  %v221 = vadd.f32 %v115, %v220
  %v222 = vpop.f32.mrb[0].mxu0
  %v223 = vpop.f32.mrb[0].mxu0
  %v224 = vadd.f32 %v115, %v223
  %v225 = vpop.f32.mrb[0].mxu0
  %226 = vmatprep.mubr.bf16.mxu0 0
  %227 = vmatmul.mubr.bf16.gmra.mrb[0].mxu0 %v137
  %v228 = vpop.f32.mrb[0].mxu0
  %v229 = vadd.f32 %v115, %v228
  %v230 = vpop.f32.mrb[0].mxu0
  %v231 = vpop.f32.mrb[0].mxu0
  %v232 = vadd.f32 %v115, %v231
  %v233 = vpop.f32.mrb[0].mxu0
  %234 = vmatprep.mubr.bf16.mxu0 0
  %235 = vmatmul.mubr.bf16.gmra.mrb[0].mxu0 %v140
  %v236 = vpop.f32.mrb[0].mxu0
  %v237 = vadd.f32 %v115, %v236
  %v238 = vpop.f32.mrb[0].mxu0
  %v239 = vpop.f32.mrb[0].mxu0
  %v240 = vadd.f32 %v115, %v239
  %v241 = vpop.f32.mrb[0].mxu0
  %242 = vmatprep.mubr.bf16.mxu0 0
  %243 = vmatmul.mubr.bf16.gmra.mrb[0].mxu0 %v143
  %v244 = vpop.f32.mrb[0].mxu0
  %v245 = vadd.f32 %v115, %v244
  %v246 = vpop.f32.mrb[0].mxu0
  %v247 = vpop.f32.mrb[0].mxu0
  %v248 = vadd.f32 %v115, %v247
  %v249 = vpop.f32.mrb[0].mxu0
  %250 = vmatprep.mubr.bf16.mxu0 0
  %251 = vmatmul.mubr.bf16.gmra.mrb[0].mxu0 %v146
  %v252 = vpop.f32.mrb[0].mxu0
  %v253 = vadd.f32 %v115, %v252
  %v254 = vpop.f32.mrb[0].mxu0
  %v255 = vpop.f32.mrb[0].mxu0
  %v256 = vadd.f32 %v115, %v255
  %v257 = vpop.f32.mrb[0].mxu0
  %258 = vmatprep.mubr.bf16.mxu0 0
  %259 = vmatmul.mubr.bf16.gmra.mrb[0].mxu0 %v149
  %v260 = vpop.f32.mrb[0].mxu0
  %v261 = vadd.f32 %v115, %v260
  %v262 = vpop.f32.mrb[0].mxu0
  %v263 = vpop.f32.mrb[0].mxu0
  %v264 = vadd.f32 %v115, %v263
  %v265 = vpop.f32.mrb[0].mxu0
  %266 = vmatprep.mubr.bf16.mxu0 0
  %267 = vmatmul.mubr.bf16.gmra.mrb[0].mxu0 %v152
  %v268 = vpop.f32.mrb[0].mxu0
  %v269 = vadd.f32 %v115, %v268
  %v270 = vpop.f32.mrb[0].mxu0
  %v271 = vpop.f32.mrb[0].mxu0
  %v272 = vadd.f32 %v115, %v271
  %v273 = vpop.f32.mrb[0].mxu0
  %274 = vmatprep.mubr.bf16.mxu0 0
  %275 = vmatmul.mubr.bf16.gmra.mrb[0].mxu0 %v155
  %v276 = vpop.f32.mrb[0].mxu0
  %v277 = vadd.f32 %v115, %v276
  %v278 = vpop.f32.mrb[0].mxu0
  %v279 = vpop.f32.mrb[0].mxu0
  %v280 = vadd.f32 %v115, %v279
  %v281 = vpop.f32.mrb[0].mxu0
  %282 = vmatprep.mubr.bf16.mxu0 0
  %283 = vmatmul.mubr.bf16.gmra.mrb[0].mxu0 %v158
  %v284 = vpop.f32.mrb[0].mxu0
  %v285 = vadd.f32 %v115, %v284
  %v286 = vpop.f32.mrb[0].mxu0
  %v287 = vpop.f32.mrb[0].mxu0
  %v288 = vadd.f32 %v115, %v287
  %v289 = vpop.f32.mrb[0].mxu0
  %290 = vmatprep.mubr.bf16.mxu0 0
  %291 = vmatmul.mubr.bf16.gmra.mrb[0].mxu0 %v161
  %v292 = vpop.f32.mrb[0].mxu0
  %v293 = vadd.f32 %v115, %v292
  %v294 = vpop.f32.mrb[0].mxu0
  %v295 = vpop.f32.mrb[0].mxu0
  %v296 = vadd.f32 %v115, %v295
  %v297 = vpop.f32.mrb[0].mxu0
  %298 = vmatprep.mubr.bf16.mxu0 0
  %299 = vmatmul.mubr.bf16.gmra.mrb[0].mxu0 %v164
  %v300 = vpop.f32.mrb[0].mxu0
  %v301 = vadd.f32 %v115, %v300
  %v302 = vpop.f32.mrb[0].mxu0
  %v303 = vpop.f32.mrb[0].mxu0
  %v304 = vadd.f32 %v115, %v303
  %v305 = vpop.f32.mrb[0].mxu0
  %306 = vmatprep.mubr.bf16.mxu0 0
  %307 = vmatmul.mubr.bf16.gmra.mrb[0].mxu0 %v167
  %v308 = vpop.f32.mrb[0].mxu0
  %v309 = vadd.f32 %v115, %v308
  %v310 = vpop.f32.mrb[0].mxu0
  %v311 = vpop.f32.mrb[0].mxu0
  %v312 = vadd.f32 %v115, %v311
  %v313 = vpop.f32.mrb[0].mxu0
  %314 = vmatprep.mubr.bf16.mxu0 0
  %315 = vmatmul.mubr.bf16.gmra.mrb[0].mxu0 %v170
  %v316 = vpop.f32.mrb[0].mxu0
  %v317 = vadd.f32 %v115, %v316
  %v318 = vpop.f32.mrb[0].mxu0
  %v319 = vpop.f32.mrb[0].mxu0
  %v320 = vadd.f32 %v115, %v319
  %v321 = vpop.f32.mrb[0].mxu0
  %322 = vmatprep.mubr.bf16.mxu0 0
  %323 = vmatmul.mubr.bf16.gmra.mrb[0].mxu0 %v173
  %v324 = vpop.f32.mrb[0].mxu0
  %v325 = vadd.f32 %v115, %v324
  %v326 = vpop.f32.mrb[0].mxu0
  %v327 = vpop.f32.mrb[0].mxu0
  %v328 = vadd.f32 %v115, %v327
  %v329 = vpop.f32.mrb[0].mxu0
  %330 = vmatprep.mubr.bf16.mxu0 0
  %331 = vmatmul.mubr.bf16.gmra.mrb[0].mxu0 %v176
  %v332 = vpop.f32.mrb[0].mxu0
  %v333 = vadd.f32 %v115, %v332
  %v334 = vpop.f32.mrb[0].mxu0
  %v335 = vpop.f32.mrb[0].mxu0
  %v336 = vadd.f32 %v115, %v335
  %v337 = vpop.f32.mrb[0].mxu0
  %338 = vdwg.mxu0
  %v339 = vxor.u32 %v213, 2147483648
  %v340 = vxor.u32 %v216, 2147483648
  %v341 = vxor.u32 %v221, 2147483648
  %v342 = vxor.u32 %v224, 2147483648
  %v343 = vxor.u32 %v229, 2147483648
  %v344 = vxor.u32 %v232, 2147483648
  %v345 = vxor.u32 %v237, 2147483648
  %v346 = vxor.u32 %v240, 2147483648
  %v347 = vxor.u32 %v245, 2147483648
  %v348 = vxor.u32 %v248, 2147483648
  %v349 = vxor.u32 %v253, 2147483648
  %v350 = vxor.u32 %v256, 2147483648
  %v351 = vxor.u32 %v261, 2147483648
  %v352 = vxor.u32 %v264, 2147483648
  %v353 = vxor.u32 %v269, 2147483648
  %v354 = vxor.u32 %v272, 2147483648
  %v355 = vxor.u32 %v277, 2147483648
  %v356 = vxor.u32 %v280, 2147483648
  %v357 = vxor.u32 %v285, 2147483648
  %v358 = vxor.u32 %v288, 2147483648
  %v359 = vxor.u32 %v293, 2147483648
  %v360 = vxor.u32 %v296, 2147483648
  %v361 = vxor.u32 %v301, 2147483648
  %v362 = vxor.u32 %v304, 2147483648
  %v363 = vxor.u32 %v309, 2147483648
  %v364 = vxor.u32 %v312, 2147483648
  %v365 = vxor.u32 %v317, 2147483648
  %v366 = vxor.u32 %v320, 2147483648
  %v367 = vxor.u32 %v325, 2147483648
  %v368 = vxor.u32 %v328, 2147483648
  %v369 = vxor.u32 %v333, 2147483648
  %v370 = vxor.u32 %v336, 2147483648
  %v371 = vmul.f32 %v339, 1.442695
  %v372 = vpow.pop %v371
  %v373 = vmul.f32 %v340, 1.442695
  %v374 = vpow.pop %v373
  %v375 = vmul.f32 %v341, 1.442695
  %v376 = vpow.pop %v375
  %v377 = vmul.f32 %v342, 1.442695
  %v378 = vpow.pop %v377
  %v379 = vmul.f32 %v343, 1.442695
  %v380 = vpow.pop %v379
  %v381 = vmul.f32 %v344, 1.442695
  %v382 = vpow.pop %v381
  %v383 = vmul.f32 %v345, 1.442695
  %v384 = vpow.pop %v383
  %v385 = vmul.f32 %v346, 1.442695
  %v386 = vpow.pop %v385
  %v387 = vmul.f32 %v347, 1.442695
  %v388 = vpow.pop %v387
  %v389 = vmul.f32 %v348, 1.442695
  %v390 = vpow.pop %v389
  %v391 = vmul.f32 %v349, 1.442695
  %v392 = vpow.pop %v391
  %v393 = vmul.f32 %v350, 1.442695
  %v394 = vpow.pop %v393
  %v395 = vmul.f32 %v351, 1.442695
  %v396 = vpow.pop %v395
  %v397 = vmul.f32 %v352, 1.442695
  %v398 = vpow.pop %v397
  %v399 = vmul.f32 %v353, 1.442695
  %v400 = vpow.pop %v399
  %v401 = vmul.f32 %v354, 1.442695
  %v402 = vpow.pop %v401
  %v403 = vmul.f32 %v355, 1.442695
  %v404 = vpow.pop %v403
  %v405 = vmul.f32 %v356, 1.442695
  %v406 = vpow.pop %v405
  %v407 = vmul.f32 %v357, 1.442695
  %v408 = vpow.pop %v407
  %v409 = vmul.f32 %v358, 1.442695
  %v410 = vpow.pop %v409
  %v411 = vmul.f32 %v359, 1.442695
  %v412 = vpow.pop %v411
  %v413 = vmul.f32 %v360, 1.442695
  %v414 = vpow.pop %v413
  %v415 = vmul.f32 %v361, 1.442695
  %v416 = vpow.pop %v415
  %v417 = vmul.f32 %v362, 1.442695
  %v418 = vpow.pop %v417
  %v419 = vmul.f32 %v363, 1.442695
  %v420 = vpow.pop %v419
  %v421 = vmul.f32 %v364, 1.442695
  %v422 = vpow.pop %v421
  %v423 = vmul.f32 %v365, 1.442695
  %v424 = vpow.pop %v423
  %v425 = vmul.f32 %v366, 1.442695
  %v426 = vpow.pop %v425
  %v427 = vmul.f32 %v367, 1.442695
  %v428 = vpow.pop %v427
  %v429 = vmul.f32 %v368, 1.442695
  %v430 = vpow.pop %v429
  %v431 = vmul.f32 %v369, 1.442695
  %v432 = vpow.pop %v431
  %v433 = vmul.f32 %v370, 1.442695
  %v434 = vpow.pop %v433
  %v435 = vadd.f32 %v372, 1.0
  %v436 = vadd.f32 %v374, 1.0
  %v437 = vadd.f32 %v376, 1.0
  %v438 = vadd.f32 %v378, 1.0
  %v439 = vadd.f32 %v380, 1.0
  %v440 = vadd.f32 %v382, 1.0
  %v441 = vadd.f32 %v384, 1.0
  %v442 = vadd.f32 %v386, 1.0
  %v443 = vadd.f32 %v388, 1.0
  %v444 = vadd.f32 %v390, 1.0
  %v445 = vadd.f32 %v392, 1.0
  %v446 = vadd.f32 %v394, 1.0
  %v447 = vadd.f32 %v396, 1.0
  %v448 = vadd.f32 %v398, 1.0
  %v449 = vadd.f32 %v400, 1.0
  %v450 = vadd.f32 %v402, 1.0
  %v451 = vadd.f32 %v404, 1.0
  %v452 = vadd.f32 %v406, 1.0
  %v453 = vadd.f32 %v408, 1.0
  %v454 = vadd.f32 %v410, 1.0
  %v455 = vadd.f32 %v412, 1.0
  %v456 = vadd.f32 %v414, 1.0
  %v457 = vadd.f32 %v416, 1.0
  %v458 = vadd.f32 %v418, 1.0
  %v459 = vadd.f32 %v420, 1.0
  %v460 = vadd.f32 %v422, 1.0
  %v461 = vadd.f32 %v424, 1.0
  %v462 = vadd.f32 %v426, 1.0
  %v463 = vadd.f32 %v428, 1.0
  %v464 = vadd.f32 %v430, 1.0
  %v465 = vadd.f32 %v432, 1.0
  %v466 = vadd.f32 %v434, 1.0
  %v467 = vrcp.pop %v435
  %v468 = vmul.f32 1.0, %v467
  %v469 = vrcp.pop %v436
  %v470 = vmul.f32 1.0, %v469
  %v471 = vrcp.pop %v437
  %v472 = vmul.f32 1.0, %v471
  %v473 = vrcp.pop %v438
  %v474 = vmul.f32 1.0, %v473
  %v475 = vrcp.pop %v439
  %v476 = vmul.f32 1.0, %v475
  %v477 = vrcp.pop %v440
  %v478 = vmul.f32 1.0, %v477
  %v479 = vrcp.pop %v441
  %v480 = vmul.f32 1.0, %v479
  %v481 = vrcp.pop %v442
  %v482 = vmul.f32 1.0, %v481
  %v483 = vrcp.pop %v443
  %v484 = vmul.f32 1.0, %v483
  %v485 = vrcp.pop %v444
  %v486 = vmul.f32 1.0, %v485
  %v487 = vrcp.pop %v445
  %v488 = vmul.f32 1.0, %v487
  %v489 = vrcp.pop %v446
  %v490 = vmul.f32 1.0, %v489
  %v491 = vrcp.pop %v447
  %v492 = vmul.f32 1.0, %v491
  %v493 = vrcp.pop %v448
  %v494 = vmul.f32 1.0, %v493
  %v495 = vrcp.pop %v449
  %v496 = vmul.f32 1.0, %v495
  %v497 = vrcp.pop %v450
  %v498 = vmul.f32 1.0, %v497
  %v499 = vrcp.pop %v451
  %v500 = vmul.f32 1.0, %v499
  %v501 = vrcp.pop %v452
  %v502 = vmul.f32 1.0, %v501
  %v503 = vrcp.pop %v453
  %v504 = vmul.f32 1.0, %v503
  %v505 = vrcp.pop %v454
  %v506 = vmul.f32 1.0, %v505
  %v507 = vrcp.pop %v455
  %v508 = vmul.f32 1.0, %v507
  %v509 = vrcp.pop %v456
  %v510 = vmul.f32 1.0, %v509
  %v511 = vrcp.pop %v457
  %v512 = vmul.f32 1.0, %v511
  %v513 = vrcp.pop %v458
  %v514 = vmul.f32 1.0, %v513
  %v515 = vrcp.pop %v459
  %v516 = vmul.f32 1.0, %v515
  %v517 = vrcp.pop %v460
  %v518 = vmul.f32 1.0, %v517
  %v519 = vrcp.pop %v461
  %v520 = vmul.f32 1.0, %v519
  %v521 = vrcp.pop %v462
  %v522 = vmul.f32 1.0, %v521
  %v523 = vrcp.pop %v463
  %v524 = vmul.f32 1.0, %v523
  %v525 = vrcp.pop %v464
  %v526 = vmul.f32 1.0, %v525
  %v527 = vrcp.pop %v465
  %v528 = vmul.f32 1.0, %v527
  %v529 = vrcp.pop %v466
  %v530 = vmul.f32 1.0, %v529
  %v531 = vmul.f32 %v213, %v468
  %v532 = vmul.f32 %v216, %v470
  %v533 = vmul.f32 %v221, %v472
  %v534 = vmul.f32 %v224, %v474
  %v535 = vmul.f32 %v229, %v476
  %v536 = vmul.f32 %v232, %v478
  %v537 = vmul.f32 %v237, %v480
  %v538 = vmul.f32 %v240, %v482
  %v539 = vmul.f32 %v245, %v484
  %v540 = vmul.f32 %v248, %v486
  %v541 = vmul.f32 %v253, %v488
  %v542 = vmul.f32 %v256, %v490
  %v543 = vmul.f32 %v261, %v492
  %v544 = vmul.f32 %v264, %v494
  %v545 = vmul.f32 %v269, %v496
  %v546 = vmul.f32 %v272, %v498
  %v547 = vmul.f32 %v277, %v500
  %v548 = vmul.f32 %v280, %v502
  %v549 = vmul.f32 %v285, %v504
  %v550 = vmul.f32 %v288, %v506
  %v551 = vmul.f32 %v293, %v508
  %v552 = vmul.f32 %v296, %v510
  %v553 = vmul.f32 %v301, %v512
  %v554 = vmul.f32 %v304, %v514
  %v555 = vmul.f32 %v309, %v516
  %v556 = vmul.f32 %v312, %v518
  %v557 = vmul.f32 %v317, %v520
  %v558 = vmul.f32 %v320, %v522
  %v559 = vmul.f32 %v325, %v524
  %v560 = vmul.f32 %v328, %v526
  %v561 = vmul.f32 %v333, %v528
  %v562 = vmul.f32 %v336, %v530
  %595 = vrot.lane.b32.xlu0 %v213, 64
  %v596 = vpop.permute.xlu0 %595
  %597 = vrot.lane.b32.xlu0 %v216, 64
  %v598 = vpop.permute.xlu0 %597
  %599 = vrot.lane.b32.xlu0 %v221, 64
  %v600 = vpop.permute.xlu0 %599
  %601 = vrot.lane.b32.xlu0 %v224, 64
  %v602 = vpop.permute.xlu0 %601
  %603 = vrot.lane.b32.xlu0 %v229, 64
  %v604 = vpop.permute.xlu0 %603
  %605 = vrot.lane.b32.xlu0 %v232, 64
  %v606 = vpop.permute.xlu0 %605
  %607 = vrot.lane.b32.xlu0 %v237, 64
  %v608 = vpop.permute.xlu0 %607
  %609 = vrot.lane.b32.xlu0 %v240, 64
  %v610 = vpop.permute.xlu0 %609
  %611 = vrot.lane.b32.xlu0 %v245, 64
  %v612 = vpop.permute.xlu0 %611
  %613 = vrot.lane.b32.xlu0 %v248, 64
  %v614 = vpop.permute.xlu0 %613
  %615 = vrot.lane.b32.xlu0 %v253, 64
  %v616 = vpop.permute.xlu0 %615
  %617 = vrot.lane.b32.xlu0 %v256, 64
  %v618 = vpop.permute.xlu0 %617
  %619 = vrot.lane.b32.xlu0 %v261, 64
  %v620 = vpop.permute.xlu0 %619
  %621 = vrot.lane.b32.xlu0 %v264, 64
  %v622 = vpop.permute.xlu0 %621
  %623 = vrot.lane.b32.xlu0 %v269, 64
  %v624 = vpop.permute.xlu0 %623
  %625 = vrot.lane.b32.xlu0 %v272, 64
  %v626 = vpop.permute.xlu0 %625
  %627 = vrot.lane.b32.xlu0 %v277, 64
  %v628 = vpop.permute.xlu0 %627
  %629 = vrot.lane.b32.xlu0 %v280, 64
  %v630 = vpop.permute.xlu0 %629
  %631 = vrot.lane.b32.xlu0 %v285, 64
  %v632 = vpop.permute.xlu0 %631
  %633 = vrot.lane.b32.xlu0 %v288, 64
  %v634 = vpop.permute.xlu0 %633
  %635 = vrot.lane.b32.xlu0 %v293, 64
  %v636 = vpop.permute.xlu0 %635
  %637 = vrot.lane.b32.xlu0 %v296, 64
  %v638 = vpop.permute.xlu0 %637
  %639 = vrot.lane.b32.xlu0 %v301, 64
  %v640 = vpop.permute.xlu0 %639
  %641 = vrot.lane.b32.xlu0 %v304, 64
  %v642 = vpop.permute.xlu0 %641
  %643 = vrot.lane.b32.xlu0 %v309, 64
  %v644 = vpop.permute.xlu0 %643
  %645 = vrot.lane.b32.xlu0 %v312, 64
  %v646 = vpop.permute.xlu0 %645
  %647 = vrot.lane.b32.xlu0 %v317, 64
  %v648 = vpop.permute.xlu0 %647
  %649 = vrot.lane.b32.xlu0 %v320, 64
  %v650 = vpop.permute.xlu0 %649
  %651 = vrot.lane.b32.xlu0 %v325, 64
  %v652 = vpop.permute.xlu0 %651
  %653 = vrot.lane.b32.xlu0 %v328, 64
  %v654 = vpop.permute.xlu0 %653
  %655 = vrot.lane.b32.xlu0 %v333, 64
  %v656 = vpop.permute.xlu0 %655
  %657 = vrot.lane.b32.xlu0 %v336, 64
  %v658 = vpop.permute.xlu0 %657
  %v691 = vmul.f32 %v531, %v596
  %v692 = vmul.f32 %v532, %v598
  %v693 = vmul.f32 %v533, %v600
  %v694 = vmul.f32 %v534, %v602
  %v695 = vmul.f32 %v535, %v604
  %v696 = vmul.f32 %v536, %v606
  %v697 = vmul.f32 %v537, %v608
  %v698 = vmul.f32 %v538, %v610
  %v699 = vmul.f32 %v539, %v612
  %v700 = vmul.f32 %v540, %v614
  %v701 = vmul.f32 %v541, %v616
  %v702 = vmul.f32 %v542, %v618
  %v703 = vmul.f32 %v543, %v620
  %v704 = vmul.f32 %v544, %v622
  %v705 = vmul.f32 %v545, %v624
  %v706 = vmul.f32 %v546, %v626
  %v707 = vmul.f32 %v547, %v628
  %v708 = vmul.f32 %v548, %v630
  %v709 = vmul.f32 %v549, %v632
  %v710 = vmul.f32 %v550, %v634
  %v711 = vmul.f32 %v551, %v636
  %v712 = vmul.f32 %v552, %v638
  %v713 = vmul.f32 %v553, %v640
  %v714 = vmul.f32 %v554, %v642
  %v715 = vmul.f32 %v555, %v644
  %v716 = vmul.f32 %v556, %v646
  %v717 = vmul.f32 %v557, %v648
  %v718 = vmul.f32 %v558, %v650
  %v719 = vmul.f32 %v559, %v652
  %v720 = vmul.f32 %v560, %v654
  %v721 = vmul.f32 %v561, %v656
  %v722 = vmul.f32 %v562, %v658
  %v723 = vpack.c.bf16 %v692, %v691
  %v724 = vpack.c.bf16 %v694, %v693
  %v725 = vpack.c.bf16 %v696, %v695
  %v726 = vpack.c.bf16 %v698, %v697
  %v727 = vpack.c.bf16 %v700, %v699
  %v728 = vpack.c.bf16 %v702, %v701
  %v729 = vpack.c.bf16 %v704, %v703
  %v730 = vpack.c.bf16 %v706, %v705
  %v731 = vpack.c.bf16 %v708, %v707
  %v732 = vpack.c.bf16 %v710, %v709
  %v733 = vpack.c.bf16 %v712, %v711
  %v734 = vpack.c.bf16 %v714, %v713
  %v735 = vpack.c.bf16 %v716, %v715
  %v736 = vpack.c.bf16 %v718, %v717
  %v737 = vpack.c.bf16 %v720, %v719
  %v738 = vpack.c.bf16 %v722, %v721
  %v739 = vld [vmem:[#allocation2] sm:$0xff]
  %v740 = vld [vmem:[#allocation2 + $0x8] sm:$0xff]
  %v741 = vld [vmem:[#allocation2 + $0x10] sm:$0xff]
  %v742 = vld [vmem:[#allocation2 + $0x18] sm:$0xff]
  %v743 = vld [vmem:[#allocation2 + $0x20] sm:$0xff]
  %v744 = vld [vmem:[#allocation2 + $0x28] sm:$0xff]
  %v745 = vld [vmem:[#allocation2 + $0x30] sm:$0xff]
  %v746 = vld [vmem:[#allocation2 + $0x38] sm:$0xff]
  %v747 = vld [vmem:[#allocation2 + $0x40] sm:$0xff]
  %v748 = vld [vmem:[#allocation2 + $0x48] sm:$0xff]
  %v749 = vld [vmem:[#allocation2 + $0x50] sm:$0xff]
  %v750 = vld [vmem:[#allocation2 + $0x58] sm:$0xff]
  %v751 = vld [vmem:[#allocation2 + $0x60] sm:$0xff]
  %v752 = vld [vmem:[#allocation2 + $0x68] sm:$0xff]
  %v753 = vld [vmem:[#allocation2 + $0x70] sm:$0xff]
  %v754 = vld [vmem:[#allocation2 + $0x78] sm:$0xff]
  %v755 = vld [vmem:[#allocation2 + $0x80] sm:$0xff]
  %v756 = vld [vmem:[#allocation2 + $0x88] sm:$0xff]
  %v757 = vld [vmem:[#allocation2 + $0x90] sm:$0xff]
  %v758 = vld [vmem:[#allocation2 + $0x98] sm:$0xff]
  %v759 = vld [vmem:[#allocation2 + $0xa0] sm:$0xff]
  %v760 = vld [vmem:[#allocation2 + $0xa8] sm:$0xff]
  %v761 = vld [vmem:[#allocation2 + $0xb0] sm:$0xff]
  %v762 = vld [vmem:[#allocation2 + $0xb8] sm:$0xff]
  %v763 = vld [vmem:[#allocation2 + $0xc0] sm:$0xff]
  %v764 = vld [vmem:[#allocation2 + $0xc8] sm:$0xff]
  %v765 = vld [vmem:[#allocation2 + $0xd0] sm:$0xff]
  %v766 = vld [vmem:[#allocation2 + $0xd8] sm:$0xff]
  %v767 = vld [vmem:[#allocation2 + $0xe0] sm:$0xff]
  %v768 = vld [vmem:[#allocation2 + $0xe8] sm:$0xff]
  %v769 = vld [vmem:[#allocation2 + $0xf0] sm:$0xff]
  %v770 = vld [vmem:[#allocation2 + $0xf8] sm:$0xff]
  %v771 = vld [vmem:[%s3] sm:$0xf]
  %v772 = vld [vmem:[%s3 + $0x4] sm:$0xf]
  %v773 = vld [vmem:[%s3 + $0x8] sm:$0xf]
  %v774 = vld [vmem:[%s3 + $0xc] sm:$0xf]
  %v775 = vld [vmem:[%s3 + $0x10] sm:$0xf]
  %v776 = vld [vmem:[%s3 + $0x14] sm:$0xf]
  %v777 = vld [vmem:[%s3 + $0x18] sm:$0xf]
  %v778 = vld [vmem:[%s3 + $0x1c] sm:$0xf]
  %v787 = vunpack.c.l.b16 %v771
  %v788 = vunpack.c.l.b16 %v772
  %v789 = vunpack.c.l.b16 %v773
  %v790 = vunpack.c.l.b16 %v774
  %v791 = vunpack.c.l.b16 %v775
  %v792 = vunpack.c.l.b16 %v776
  %v793 = vunpack.c.l.b16 %v777
  %v794 = vunpack.c.l.b16 %v778
  %v795 = vpack.c.b16 %v788, %v787
  %v796 = vpack.c.b16 %v790, %v789
  %v797 = vpack.c.b16 %v792, %v791
  %v798 = vpack.c.b16 %v794, %v793
  %vm803 = vcmask 523264
  %v805 = vsel %vm803, %v723, 0
  %v808 = vsel %vm803, %v724, 0
  %v811 = vsel %vm803, %v725, 0
  %v814 = vsel %vm803, %v726, 0
  %v817 = vsel %vm803, %v727, 0
  %v820 = vsel %vm803, %v728, 0
  %v823 = vsel %vm803, %v729, 0
  %v826 = vsel %vm803, %v730, 0
  %v829 = vsel %vm803, %v731, 0
  %v832 = vsel %vm803, %v732, 0
  %v835 = vsel %vm803, %v733, 0
  %v838 = vsel %vm803, %v734, 0
  %v841 = vsel %vm803, %v735, 0
  %v844 = vsel %vm803, %v736, 0
  %v847 = vsel %vm803, %v737, 0
  %v850 = vsel %vm803, %v738, 0
  %852 = vmatprep.subr.bf16.mxu0 0
  %853 = vmatpush1.bf16.msra.mxu0 %v795
  %854 = vmatprep.subr.bf16.mxu0 0
  %855 = vmatpush1.bf16.msra.mxu0 %v796
  %856 = vmatprep.subr.bf16.mxu0 0
  %857 = vmatpush1.bf16.msra.mxu0 %v797
  %858 = vmatprep.subr.bf16.mxu0 0
  %859 = vmatpush1.bf16.msra.mxu0 %v798
  %860 = vmatprep.subr.bf16.mxu0 0
  %861 = vmatpush1.bf16.msra.mxu0 0
  %862 = vmatprep.subr.bf16.mxu0 0
  %863 = vmatpush1.bf16.msra.mxu0 0
  %864 = vmatprep.subr.bf16.mxu0 0
  %865 = vmatpush1.bf16.msra.mxu0 0
  %866 = vmatprep.subr.bf16.mxu0 0
  %867 = vmatpush1.bf16.msra.mxu0 0
  %868 = vmatprep.subr.bf16.mxu0 0
  %869 = vmatpush1.bf16.msra.mxu0 0
  %870 = vmatprep.subr.bf16.mxu0 0
  %871 = vmatpush1.bf16.msra.mxu0 0
  %872 = vmatprep.subr.bf16.mxu0 0
  %873 = vmatpush1.bf16.msra.mxu0 0
  %874 = vmatprep.subr.bf16.mxu0 0
  %875 = vmatpush1.bf16.msra.mxu0 0
  %876 = vmatprep.subr.bf16.mxu0 0
  %877 = vmatpush1.bf16.msra.mxu0 0
  %878 = vmatprep.subr.bf16.mxu0 0
  %879 = vmatpush1.bf16.msra.mxu0 0
  %880 = vmatprep.subr.bf16.mxu0 0
  %881 = vmatpush1.bf16.msra.mxu0 0
  %882 = vmatprep.subr.bf16.mxu0 0
  %883 = vmatpush1.bf16.msra.mxu0 0
  %884 = vmatprep.mubr.bf16.mxu0 0
  %885 = vmatmul.mubr.bf16.gmra.mrb[0].mxu0 %v805
  %v886 = vpop.f32.mrb[0].mxu0
  %v887 = vadd.f32 0.0, %v886
  %v888 = vpop.f32.mrb[0].mxu0
  %v889 = vpop.f32.mrb[0].mxu0
  %v890 = vadd.f32 0.0, %v889
  %v891 = vpop.f32.mrb[0].mxu0
  %892 = vmatprep.mubr.bf16.mxu0 0
  %893 = vmatmul.mubr.bf16.gmra.mrb[0].mxu0 %v808
  %v894 = vpop.f32.mrb[0].mxu0
  %v895 = vadd.f32 0.0, %v894
  %v896 = vpop.f32.mrb[0].mxu0
  %v897 = vpop.f32.mrb[0].mxu0
  %v898 = vadd.f32 0.0, %v897
  %v899 = vpop.f32.mrb[0].mxu0
  %900 = vmatprep.mubr.bf16.mxu0 0
  %901 = vmatmul.mubr.bf16.gmra.mrb[0].mxu0 %v811
  %v902 = vpop.f32.mrb[0].mxu0
  %v903 = vadd.f32 0.0, %v902
  %v904 = vpop.f32.mrb[0].mxu0
  %v905 = vpop.f32.mrb[0].mxu0
  %v906 = vadd.f32 0.0, %v905
  %v907 = vpop.f32.mrb[0].mxu0
  %908 = vmatprep.mubr.bf16.mxu0 0
  %909 = vmatmul.mubr.bf16.gmra.mrb[0].mxu0 %v814
  %v910 = vpop.f32.mrb[0].mxu0
  %v911 = vadd.f32 0.0, %v910
  %v912 = vpop.f32.mrb[0].mxu0
  %v913 = vpop.f32.mrb[0].mxu0
  %v914 = vadd.f32 0.0, %v913
  %v915 = vpop.f32.mrb[0].mxu0
  %916 = vmatprep.mubr.bf16.mxu0 0
  %917 = vmatmul.mubr.bf16.gmra.mrb[0].mxu0 %v817
  %v918 = vpop.f32.mrb[0].mxu0
  %v919 = vadd.f32 0.0, %v918
  %v920 = vpop.f32.mrb[0].mxu0
  %v921 = vpop.f32.mrb[0].mxu0
  %v922 = vadd.f32 0.0, %v921
  %v923 = vpop.f32.mrb[0].mxu0
  %924 = vmatprep.mubr.bf16.mxu0 0
  %925 = vmatmul.mubr.bf16.gmra.mrb[0].mxu0 %v820
  %v926 = vpop.f32.mrb[0].mxu0
  %v927 = vadd.f32 0.0, %v926
  %v928 = vpop.f32.mrb[0].mxu0
  %v929 = vpop.f32.mrb[0].mxu0
  %v930 = vadd.f32 0.0, %v929
  %v931 = vpop.f32.mrb[0].mxu0
  %932 = vmatprep.mubr.bf16.mxu0 0
  %933 = vmatmul.mubr.bf16.gmra.mrb[0].mxu0 %v823
  %v934 = vpop.f32.mrb[0].mxu0
  %v935 = vadd.f32 0.0, %v934
  %v936 = vpop.f32.mrb[0].mxu0
  %v937 = vpop.f32.mrb[0].mxu0
  %v938 = vadd.f32 0.0, %v937
  %v939 = vpop.f32.mrb[0].mxu0
  %940 = vmatprep.mubr.bf16.mxu0 0
  %941 = vmatmul.mubr.bf16.gmra.mrb[0].mxu0 %v826
  %v942 = vpop.f32.mrb[0].mxu0
  %v943 = vadd.f32 0.0, %v942
  %v944 = vpop.f32.mrb[0].mxu0
  %v945 = vpop.f32.mrb[0].mxu0
  %v946 = vadd.f32 0.0, %v945
  %v947 = vpop.f32.mrb[0].mxu0
  %948 = vmatprep.mubr.bf16.mxu0 0
  %949 = vmatmul.mubr.bf16.gmra.mrb[0].mxu0 %v829
  %v950 = vpop.f32.mrb[0].mxu0
  %v951 = vadd.f32 0.0, %v950
  %v952 = vpop.f32.mrb[0].mxu0
  %v953 = vpop.f32.mrb[0].mxu0
  %v954 = vadd.f32 0.0, %v953
  %v955 = vpop.f32.mrb[0].mxu0
  %956 = vmatprep.mubr.bf16.mxu0 0
  %957 = vmatmul.mubr.bf16.gmra.mrb[0].mxu0 %v832
  %v958 = vpop.f32.mrb[0].mxu0
  %v959 = vadd.f32 0.0, %v958
  %v960 = vpop.f32.mrb[0].mxu0
  %v961 = vpop.f32.mrb[0].mxu0
  %v962 = vadd.f32 0.0, %v961
  %v963 = vpop.f32.mrb[0].mxu0
  %964 = vmatprep.mubr.bf16.mxu0 0
  %965 = vmatmul.mubr.bf16.gmra.mrb[0].mxu0 %v835
  %v966 = vpop.f32.mrb[0].mxu0
  %v967 = vadd.f32 0.0, %v966
  %v968 = vpop.f32.mrb[0].mxu0
  %v969 = vpop.f32.mrb[0].mxu0
  %v970 = vadd.f32 0.0, %v969
  %v971 = vpop.f32.mrb[0].mxu0
  %972 = vmatprep.mubr.bf16.mxu0 0
  %973 = vmatmul.mubr.bf16.gmra.mrb[0].mxu0 %v838
  %v974 = vpop.f32.mrb[0].mxu0
  %v975 = vadd.f32 0.0, %v974
  %v976 = vpop.f32.mrb[0].mxu0
  %v977 = vpop.f32.mrb[0].mxu0
  %v978 = vadd.f32 0.0, %v977
  %v979 = vpop.f32.mrb[0].mxu0
  %980 = vmatprep.mubr.bf16.mxu0 0
  %981 = vmatmul.mubr.bf16.gmra.mrb[0].mxu0 %v841
  %v982 = vpop.f32.mrb[0].mxu0
  %v983 = vadd.f32 0.0, %v982
  %v984 = vpop.f32.mrb[0].mxu0
  %v985 = vpop.f32.mrb[0].mxu0
  %v986 = vadd.f32 0.0, %v985
  %v987 = vpop.f32.mrb[0].mxu0
  %988 = vmatprep.mubr.bf16.mxu0 0
  %989 = vmatmul.mubr.bf16.gmra.mrb[0].mxu0 %v844
  %v990 = vpop.f32.mrb[0].mxu0
  %v991 = vadd.f32 0.0, %v990
  %v992 = vpop.f32.mrb[0].mxu0
  %v993 = vpop.f32.mrb[0].mxu0
  %v994 = vadd.f32 0.0, %v993
  %v995 = vpop.f32.mrb[0].mxu0
  %996 = vmatprep.mubr.bf16.mxu0 0
  %997 = vmatmul.mubr.bf16.gmra.mrb[0].mxu0 %v847
  %v998 = vpop.f32.mrb[0].mxu0
  %v999 = vadd.f32 0.0, %v998
  %v1000 = vpop.f32.mrb[0].mxu0
  %v1001 = vpop.f32.mrb[0].mxu0
  %v1002 = vadd.f32 0.0, %v1001
  %v1003 = vpop.f32.mrb[0].mxu0
  %1004 = vmatprep.mubr.bf16.mxu0 0
  %1005 = vmatmul.mubr.bf16.gmra.mrb[0].mxu0 %v850
  %v1006 = vpop.f32.mrb[0].mxu0
  %v1007 = vadd.f32 0.0, %v1006
  %v1008 = vpop.f32.mrb[0].mxu0
  %v1009 = vpop.f32.mrb[0].mxu0
  %v1010 = vadd.f32 0.0, %v1009
  %v1011 = vpop.f32.mrb[0].mxu0
  %1012 = vdwg.mxu0
  %v1013 = vadd.f32 %v739, %v887
  %v1014 = vadd.f32 %v740, %v890
  %v1015 = vadd.f32 %v741, %v895
  %v1016 = vadd.f32 %v742, %v898
  %v1017 = vadd.f32 %v743, %v903
  %v1018 = vadd.f32 %v744, %v906
  %v1019 = vadd.f32 %v745, %v911
  %v1020 = vadd.f32 %v746, %v914
  %v1021 = vadd.f32 %v747, %v919
  %v1022 = vadd.f32 %v748, %v922
  %v1023 = vadd.f32 %v749, %v927
  %v1024 = vadd.f32 %v750, %v930
  %v1025 = vadd.f32 %v751, %v935
  %v1026 = vadd.f32 %v752, %v938
  %v1027 = vadd.f32 %v753, %v943
  %v1028 = vadd.f32 %v754, %v946
  %v1029 = vadd.f32 %v755, %v951
  %v1030 = vadd.f32 %v756, %v954
  %v1031 = vadd.f32 %v757, %v959
  %v1032 = vadd.f32 %v758, %v962
  %v1033 = vadd.f32 %v759, %v967
  %v1034 = vadd.f32 %v760, %v970
  %v1035 = vadd.f32 %v761, %v975
  %v1036 = vadd.f32 %v762, %v978
  %v1037 = vadd.f32 %v763, %v983
  %v1038 = vadd.f32 %v764, %v986
  %v1039 = vadd.f32 %v765, %v991
  %v1040 = vadd.f32 %v766, %v994
  %v1041 = vadd.f32 %v767, %v999
  %v1042 = vadd.f32 %v768, %v1002
  %v1043 = vadd.f32 %v769, %v1007
  %v1044 = vadd.f32 %v770, %v1010
  %1045 = vst.msk [vmem:[#allocation2] sm:$0xff] %vm129, %v1013
  %1046 = vst.msk [vmem:[#allocation2 + $0x8] sm:$0xff] %vm129, %v1014
  %1047 = vst.msk [vmem:[#allocation2 + $0x10] sm:$0xff] %vm129, %v1015
  %1048 = vst.msk [vmem:[#allocation2 + $0x18] sm:$0xff] %vm129, %v1016
  %1049 = vst.msk [vmem:[#allocation2 + $0x20] sm:$0xff] %vm129, %v1017
  %1050 = vst.msk [vmem:[#allocation2 + $0x28] sm:$0xff] %vm129, %v1018
  %1051 = vst.msk [vmem:[#allocation2 + $0x30] sm:$0xff] %vm129, %v1019
  %1052 = vst.msk [vmem:[#allocation2 + $0x38] sm:$0xff] %vm129, %v1020
  %1053 = vst.msk [vmem:[#allocation2 + $0x40] sm:$0xff] %vm129, %v1021
  %1054 = vst.msk [vmem:[#allocation2 + $0x48] sm:$0xff] %vm129, %v1022
  %1055 = vst.msk [vmem:[#allocation2 + $0x50] sm:$0xff] %vm129, %v1023
  %1056 = vst.msk [vmem:[#allocation2 + $0x58] sm:$0xff] %vm129, %v1024
  %1057 = vst.msk [vmem:[#allocation2 + $0x60] sm:$0xff] %vm129, %v1025
  %1058 = vst.msk [vmem:[#allocation2 + $0x68] sm:$0xff] %vm129, %v1026
  %1059 = vst.msk [vmem:[#allocation2 + $0x70] sm:$0xff] %vm129, %v1027
  %1060 = vst.msk [vmem:[#allocation2 + $0x78] sm:$0xff] %vm129, %v1028
  %1061 = vst.msk [vmem:[#allocation2 + $0x80] sm:$0xff] %vm129, %v1029
  %1062 = vst.msk [vmem:[#allocation2 + $0x88] sm:$0xff] %vm129, %v1030
  %1063 = vst.msk [vmem:[#allocation2 + $0x90] sm:$0xff] %vm129, %v1031
  %1064 = vst.msk [vmem:[#allocation2 + $0x98] sm:$0xff] %vm129, %v1032
  %1065 = vst.msk [vmem:[#allocation2 + $0xa0] sm:$0xff] %vm129, %v1033
  %1066 = vst.msk [vmem:[#allocation2 + $0xa8] sm:$0xff] %vm129, %v1034
  %1067 = vst.msk [vmem:[#allocation2 + $0xb0] sm:$0xff] %vm129, %v1035
  %1068 = vst.msk [vmem:[#allocation2 + $0xb8] sm:$0xff] %vm129, %v1036
  %1069 = vst.msk [vmem:[#allocation2 + $0xc0] sm:$0xff] %vm129, %v1037
  %1070 = vst.msk [vmem:[#allocation2 + $0xc8] sm:$0xff] %vm129, %v1038
  %1071 = vst.msk [vmem:[#allocation2 + $0xd0] sm:$0xff] %vm129, %v1039
  %1072 = vst.msk [vmem:[#allocation2 + $0xd8] sm:$0xff] %vm129, %v1040
  %1073 = vst.msk [vmem:[#allocation2 + $0xe0] sm:$0xff] %vm129, %v1041
  %1074 = vst.msk [vmem:[#allocation2 + $0xe8] sm:$0xff] %vm129, %v1042
  %1075 = vst.msk [vmem:[#allocation2 + $0xf0] sm:$0xff] %vm129, %v1043
  %1076 = vst.msk [vmem:[#allocation2 + $0xf8] sm:$0xff] %vm129, %v1044
  // Predicated region
  $region26: #{tpu_custom_call.1} parent=0 // pred_check
    %p1077 = pneg %p21
  $region27: #{tpu_custom_call.1} parent=0 // pred_check_branch
    %1079 = sbr.rel (%p1077) target = $region29
  $region28: #{tpu_custom_call.1} parent=0 // pred_region
    %v1080 = vld [vmem:[#allocation2] sm:$0xff]
    %v1081 = vld [vmem:[#allocation2 + $0x8] sm:$0xff]
    %v1082 = vld [vmem:[#allocation2 + $0x10] sm:$0xff]
    %v1083 = vld [vmem:[#allocation2 + $0x18] sm:$0xff]
    %v1084 = vld [vmem:[#allocation2 + $0x20] sm:$0xff]
    %v1085 = vld [vmem:[#allocation2 + $0x28] sm:$0xff]
    %v1086 = vld [vmem:[#allocation2 + $0x30] sm:$0xff]
    %v1087 = vld [vmem:[#allocation2 + $0x38] sm:$0xff]
    %v1088 = vld [vmem:[#allocation2 + $0x40] sm:$0xff]
    %v1089 = vld [vmem:[#allocation2 + $0x48] sm:$0xff]
    %v1090 = vld [vmem:[#allocation2 + $0x50] sm:$0xff]
    %v1091 = vld [vmem:[#allocation2 + $0x58] sm:$0xff]
    %v1092 = vld [vmem:[#allocation2 + $0x60] sm:$0xff]
    %v1093 = vld [vmem:[#allocation2 + $0x68] sm:$0xff]
    %v1094 = vld [vmem:[#allocation2 + $0x70] sm:$0xff]
    %v1095 = vld [vmem:[#allocation2 + $0x78] sm:$0xff]
    %v1096 = vld [vmem:[#allocation2 + $0x80] sm:$0xff]
    %v1097 = vld [vmem:[#allocation2 + $0x88] sm:$0xff]
    %v1098 = vld [vmem:[#allocation2 + $0x90] sm:$0xff]
    %v1099 = vld [vmem:[#allocation2 + $0x98] sm:$0xff]
    %v1100 = vld [vmem:[#allocation2 + $0xa0] sm:$0xff]
    %v1101 = vld [vmem:[#allocation2 + $0xa8] sm:$0xff]
    %v1102 = vld [vmem:[#allocation2 + $0xb0] sm:$0xff]
    %v1103 = vld [vmem:[#allocation2 + $0xb8] sm:$0xff]
    %v1104 = vld [vmem:[#allocation2 + $0xc0] sm:$0xff]
    %v1105 = vld [vmem:[#allocation2 + $0xc8] sm:$0xff]
    %v1106 = vld [vmem:[#allocation2 + $0xd0] sm:$0xff]
    %v1107 = vld [vmem:[#allocation2 + $0xd8] sm:$0xff]
    %v1108 = vld [vmem:[#allocation2 + $0xe0] sm:$0xff]
    %v1109 = vld [vmem:[#allocation2 + $0xe8] sm:$0xff]
    %v1110 = vld [vmem:[#allocation2 + $0xf0] sm:$0xff]
    %v1111 = vld [vmem:[#allocation2 + $0xf8] sm:$0xff]
    %v1112 = vld [vmem:[%s4] sm:$0x1]
    %v1114 = vlaneseq
    %v1115 = vshrl.u32 %v1114, 7
    %v1116 = vsub.s32 0, %v1115
    %v1117 = vrot.slane %v1112, %v1116
    %v1119 = vadd.f32 %v1080, %v1117
    %v1120 = vadd.f32 %v1081, %v1117
    %v1121 = vadd.f32 %v1082, %v1117
    %v1122 = vadd.f32 %v1083, %v1117
    %v1123 = vadd.f32 %v1084, %v1117
    %v1124 = vadd.f32 %v1085, %v1117
    %v1125 = vadd.f32 %v1086, %v1117
    %v1126 = vadd.f32 %v1087, %v1117
    %v1127 = vadd.f32 %v1088, %v1117
    %v1128 = vadd.f32 %v1089, %v1117
    %v1129 = vadd.f32 %v1090, %v1117
    %v1130 = vadd.f32 %v1091, %v1117
    %v1131 = vadd.f32 %v1092, %v1117
    %v1132 = vadd.f32 %v1093, %v1117
    %v1133 = vadd.f32 %v1094, %v1117
    %v1134 = vadd.f32 %v1095, %v1117
    %v1135 = vadd.f32 %v1096, %v1117
    %v1136 = vadd.f32 %v1097, %v1117
    %v1137 = vadd.f32 %v1098, %v1117
    %v1138 = vadd.f32 %v1099, %v1117
    %v1139 = vadd.f32 %v1100, %v1117
    %v1140 = vadd.f32 %v1101, %v1117
    %v1141 = vadd.f32 %v1102, %v1117
    %v1142 = vadd.f32 %v1103, %v1117
    %v1143 = vadd.f32 %v1104, %v1117
    %v1144 = vadd.f32 %v1105, %v1117
    %v1145 = vadd.f32 %v1106, %v1117
    %v1146 = vadd.f32 %v1107, %v1117
    %v1147 = vadd.f32 %v1108, %v1117
    %v1148 = vadd.f32 %v1109, %v1117
    %v1149 = vadd.f32 %v1110, %v1117
    %v1150 = vadd.f32 %v1111, %v1117
    %v1151 = vpack.c.bf16 %v1120, %v1119
    %v1152 = vpack.c.bf16 %v1122, %v1121
    %v1153 = vpack.c.bf16 %v1124, %v1123
    %v1154 = vpack.c.bf16 %v1126, %v1125
    %v1155 = vpack.c.bf16 %v1128, %v1127
    %v1156 = vpack.c.bf16 %v1130, %v1129
    %v1157 = vpack.c.bf16 %v1132, %v1131
    %v1158 = vpack.c.bf16 %v1134, %v1133
    %v1159 = vpack.c.bf16 %v1136, %v1135
    %v1160 = vpack.c.bf16 %v1138, %v1137
    %v1161 = vpack.c.bf16 %v1140, %v1139
    %v1162 = vpack.c.bf16 %v1142, %v1141
    %v1163 = vpack.c.bf16 %v1144, %v1143
    %v1164 = vpack.c.bf16 %v1146, %v1145
    %v1165 = vpack.c.bf16 %v1148, %v1147
    %v1166 = vpack.c.bf16 %v1150, %v1149
    %v1183 = vunpack.c.l.b16 %v1151
    %v1184 = vunpack.c.h.b16 %v1151
    %v1185 = vunpack.c.l.b16 %v1152
    %v1186 = vunpack.c.h.b16 %v1152
    %v1187 = vunpack.c.l.b16 %v1153
    %v1188 = vunpack.c.h.b16 %v1153
    %v1189 = vunpack.c.l.b16 %v1154
    %v1190 = vunpack.c.h.b16 %v1154
    %v1191 = vunpack.c.l.b16 %v1155
    %v1192 = vunpack.c.h.b16 %v1155
    %v1193 = vunpack.c.l.b16 %v1156
    %v1194 = vunpack.c.h.b16 %v1156
    %v1195 = vunpack.c.l.b16 %v1157
    %v1196 = vunpack.c.h.b16 %v1157
    %v1197 = vunpack.c.l.b16 %v1158
    %v1198 = vunpack.c.h.b16 %v1158
    %v1199 = vunpack.c.l.b16 %v1159
    %v1200 = vunpack.c.h.b16 %v1159
    %v1201 = vunpack.c.l.b16 %v1160
    %v1202 = vunpack.c.h.b16 %v1160
    %v1203 = vunpack.c.l.b16 %v1161
    %v1204 = vunpack.c.h.b16 %v1161
    %v1205 = vunpack.c.l.b16 %v1162
    %v1206 = vunpack.c.h.b16 %v1162
    %v1207 = vunpack.c.l.b16 %v1163
    %v1208 = vunpack.c.h.b16 %v1163
    %v1209 = vunpack.c.l.b16 %v1164
    %v1210 = vunpack.c.h.b16 %v1164
    %v1211 = vunpack.c.l.b16 %v1165
    %v1212 = vunpack.c.h.b16 %v1165
    %v1213 = vunpack.c.l.b16 %v1166
    %v1214 = vunpack.c.h.b16 %v1166
    %v1215 = vpack.c.b16 %v1183, %v1183
    %v1216 = vpack.c.b16 %v1184, %v1184
    %v1217 = vpack.c.b16 %v1185, %v1185
    %v1218 = vpack.c.b16 %v1186, %v1186
    %v1219 = vpack.c.b16 %v1187, %v1187
    %v1220 = vpack.c.b16 %v1188, %v1188
    %v1221 = vpack.c.b16 %v1189, %v1189
    %v1222 = vpack.c.b16 %v1190, %v1190
    %v1223 = vpack.c.b16 %v1191, %v1191
    %v1224 = vpack.c.b16 %v1192, %v1192
    %v1225 = vpack.c.b16 %v1193, %v1193
    %v1226 = vpack.c.b16 %v1194, %v1194
    %v1227 = vpack.c.b16 %v1195, %v1195
    %v1228 = vpack.c.b16 %v1196, %v1196
    %v1229 = vpack.c.b16 %v1197, %v1197
    %v1230 = vpack.c.b16 %v1198, %v1198
    %v1231 = vpack.c.b16 %v1199, %v1199
    %v1232 = vpack.c.b16 %v1200, %v1200
    %v1233 = vpack.c.b16 %v1201, %v1201
    %v1234 = vpack.c.b16 %v1202, %v1202
    %v1235 = vpack.c.b16 %v1203, %v1203
    %v1236 = vpack.c.b16 %v1204, %v1204
    %v1237 = vpack.c.b16 %v1205, %v1205
    %v1238 = vpack.c.b16 %v1206, %v1206
    %v1239 = vpack.c.b16 %v1207, %v1207
    %v1240 = vpack.c.b16 %v1208, %v1208
    %v1241 = vpack.c.b16 %v1209, %v1209
    %v1242 = vpack.c.b16 %v1210, %v1210
    %v1243 = vpack.c.b16 %v1211, %v1211
    %v1244 = vpack.c.b16 %v1212, %v1212
    %v1245 = vpack.c.b16 %v1213, %v1213
    %v1246 = vpack.c.b16 %v1214, %v1214
    %vm1279 = vcmask 257024
    %1280 = vst.msk [vmem:[%s5] sm:$0xf] %vm1279, %v1215
    %1281 = vst.msk [vmem:[%s5 + $0x4] sm:$0xf] %vm1279, %v1216
    %1282 = vst.msk [vmem:[%s5 + $0x8] sm:$0xf] %vm1279, %v1217
    %1283 = vst.msk [vmem:[%s5 + $0xc] sm:$0xf] %vm1279, %v1218
    %1284 = vst.msk [vmem:[%s5 + $0x10] sm:$0xf] %vm1279, %v1219
    %1285 = vst.msk [vmem:[%s5 + $0x14] sm:$0xf] %vm1279, %v1220
    %1286 = vst.msk [vmem:[%s5 + $0x18] sm:$0xf] %vm1279, %v1221
    %1287 = vst.msk [vmem:[%s5 + $0x1c] sm:$0xf] %vm1279, %v1222
    %1288 = vst.msk [vmem:[%s5 + $0x20] sm:$0xf] %vm1279, %v1223
    %1289 = vst.msk [vmem:[%s5 + $0x24] sm:$0xf] %vm1279, %v1224
    %1290 = vst.msk [vmem:[%s5 + $0x28] sm:$0xf] %vm1279, %v1225
    %1291 = vst.msk [vmem:[%s5 + $0x2c] sm:$0xf] %vm1279, %v1226
    %1292 = vst.msk [vmem:[%s5 + $0x30] sm:$0xf] %vm1279, %v1227
    %1293 = vst.msk [vmem:[%s5 + $0x34] sm:$0xf] %vm1279, %v1228
    %1294 = vst.msk [vmem:[%s5 + $0x38] sm:$0xf] %vm1279, %v1229
    %1295 = vst.msk [vmem:[%s5 + $0x3c] sm:$0xf] %vm1279, %v1230
    %1296 = vst.msk [vmem:[%s5 + $0x40] sm:$0xf] %vm1279, %v1231
    %1297 = vst.msk [vmem:[%s5 + $0x44] sm:$0xf] %vm1279, %v1232
    %1298 = vst.msk [vmem:[%s5 + $0x48] sm:$0xf] %vm1279, %v1233
    %1299 = vst.msk [vmem:[%s5 + $0x4c] sm:$0xf] %vm1279, %v1234
    %1300 = vst.msk [vmem:[%s5 + $0x50] sm:$0xf] %vm1279, %v1235
    %1301 = vst.msk [vmem:[%s5 + $0x54] sm:$0xf] %vm1279, %v1236
    %1302 = vst.msk [vmem:[%s5 + $0x58] sm:$0xf] %vm1279, %v1237
    %1303 = vst.msk [vmem:[%s5 + $0x5c] sm:$0xf] %vm1279, %v1238
    %1304 = vst.msk [vmem:[%s5 + $0x60] sm:$0xf] %vm1279, %v1239
    %1305 = vst.msk [vmem:[%s5 + $0x64] sm:$0xf] %vm1279, %v1240
    %1306 = vst.msk [vmem:[%s5 + $0x68] sm:$0xf] %vm1279, %v1241
    %1307 = vst.msk [vmem:[%s5 + $0x6c] sm:$0xf] %vm1279, %v1242
    %1308 = vst.msk [vmem:[%s5 + $0x70] sm:$0xf] %vm1279, %v1243
    %1309 = vst.msk [vmem:[%s5 + $0x74] sm:$0xf] %vm1279, %v1244
    %1310 = vst.msk [vmem:[%s5 + $0x78] sm:$0xf] %vm1279, %v1245
    %1311 = vst.msk [vmem:[%s5 + $0x7c] sm:$0xf] %vm1279, %v1246
  $region29: #{tpu_custom_call.1} parent=0 // pred_fallthru
    _
  // Predicated region
  $region30: #{tpu_custom_call.1} parent=0 // pred_check
    _
  $region31: #{tpu_custom_call.1} parent=0 // pred_check_branch
    %1313 = sbr.rel (0) target = $region33
  $region32: #{tpu_custom_call.1} parent=0 // pred_region
    _
  $region33: #{tpu_custom_call.1} parent=0 // pred_fallthru
    _
  // Predicated region
  $region34: #{tpu_custom_call.1} parent=0 // pred_check
    _
  $region35: #{tpu_custom_call.1} parent=0 // pred_check_branch
    %1315 = sbr.rel (0) target = $region37
  $region36: #{tpu_custom_call.1} parent=0 // pred_region
    _
  $region37: #{tpu_custom_call.1} parent=0 // pred_fallthru
    _

</llo_original>
